<compile_context>
chip_gen: v7x
topology: tpu7x:2x2x1
jax: 0.10.0
libtpu: 0.0.40
codegen_flags: <defaults>
</compile_context>

<pallas_src>
import math

import numpy as np
import jax
import jax.numpy as jnp
from jax.experimental import pallas as pl
from jax.experimental.pallas import tpu as pltpu

SIZE = 8          # self.size in the module
STEEPNESS = 10.0  # steepness passed to DiffSortNet
_INV_PI = 1.0 / math.pi
# distribution = 'cauchy', sorting_network_type = 'odd_even', interpolation_type = None


def _make_atan_odd_coeffs(deg=15):
    """Odd monomial coefficients (c1, c3, ..., c_deg) of the Chebyshev-truncated polynomial
    of atan on [-1, 1]; max abs error ~4e-8 at deg=15.  Computed once at import with numpy,
    so they are compile-time constants inside the kernel (pure VPU Horner evaluation)."""
    n = 512
    nodes = np.cos((2.0 * np.arange(n) + 1.0) / (2.0 * n) * np.pi)
    cheb = np.polynomial.chebyshev.chebfit(nodes, np.arctan(nodes), deg)
    mono = np.polynomial.chebyshev.cheb2poly(cheb)
    return tuple(float(mono[k]) for k in range(1, deg + 1, 2))


_ATAN_ODD_COEFFS = _make_atan_odd_coeffs(15)


def _recip(x):
    """1/x via the EUP approximate reciprocal + two Newton-Raphson steps (VPU-only refinement)."""
    r = pl.reciprocal(x, approx=True)
    r = r * (2.0 - x * r)
    r = r * (2.0 - x * r)
    return r


def _atan(v):
    """atan(v): |v| <= 1 -> odd degree-15 polynomial (VPU); |v| > 1 -> pi/2 - poly(1/|v|).
    Exactly one EUP pass (the approx reciprocal) per call; abs err < ~1e-7."""
    s = jnp.where(v >= 0.0, 1.0, -1.0).astype(jnp.float32)
    x = jnp.abs(v)
    big = x > 1.0
    inv = _recip(jnp.maximum(x, 1.0))                        # only selected where big
    xr = jnp.where(big, inv, x)                              # now in [0, 1]
    t2 = xr * xr
    p = jnp.float32(_ATAN_ODD_COEFFS[-1])
    for c in reversed(_ATAN_ODD_COEFFS[:-1]):
        p = p * t2 + c
    a = xr * p
    a = jnp.where(big, (math.pi / 2.0) - a, a)
    return s * a


def _diffsort_loss_kernel(pred_ref, labels_ref, out_ref):
    f32 = jnp.float32
    N, Bt = pred_ref.shape                                   # (8, b_tile), batch on lanes

    # DiffSortNet is applied to -pred_scores (sort descending by score)
    x = -pred_ref[...].astype(f32)                           # (N, Bt)

    # hoisted loop-invariant full-tile constants (JAX does not CSE broadcast_in_dim)
    pos_b = jax.lax.broadcasted_iota(jnp.int32, (N, Bt), 0)  # sublane index (position)
    odd_row = (pos_b & 1) == 1
    low_even = jnp.logical_not(odd_row)                      # pair starts on even layers: 0,2,4,6
    low_odd = odd_row & (pos_b < N - 1)                      # pair starts on odd layers:  1,3,5
    high_odd = jnp.logical_not(odd_row) & (pos_b > 0) & (pos_b < N - 1)   # 2,4,6

    # relaxed permutation P[b, o, p] stored as 8 slabs Xp[p][o, b]; init = identity
    Xp = [(pos_b == p).astype(f32) for p in range(N)]

    pair_starts = (tuple(range(0, N - 1, 2)),                # even layers: (0,1)(2,3)(4,5)(6,7)
                   tuple(range(1, N - 1, 2)))                # odd layers:  (1,2)(3,4)(5,6)

    for layer in range(N):                                   # odd-even network: L = N, unrolled
        s = layer % 2
        low = low_even if s == 0 else low_odd

        # full-tile comparator math (no sublane slicing / concatenation):
        # diff duplicates each pair's (x[i+1] - x[i]) on both of its rows.
        # (jnp.roll on the 8-sublane axis lowers to cheap in-vreg sublane shuffles.)
        x_dn = jnp.roll(x, -1, axis=0)                       # x_dn[o] = x[(o+1) % N]
        x_up = jnp.roll(x, 1, axis=0)                        # x_up[o] = x[(o-1) % N]
        diff = jnp.where(low, x_dn - x, x - x_up)
        alpha8 = _atan(STEEPNESS * diff) * _INV_PI + 0.5     # Cauchy CDF relaxation
        adm = alpha8 * diff

        # value update: x[i] <- a*xi + (1-a)*xj ; x[i+1] <- (1-a)*xi + a*xj
        if s == 0:
            x = jnp.where(low, x_dn - adm, x_up + adm)
        else:
            x = jnp.where(low, x_dn - adm,
                          jnp.where(high_odd, x_up + adm, x))  # rows 0, N-1 pass through

        # permutation update: the pair's alpha blends whole (N_orig, Bt) column slabs (pure VPU)
        for i in pair_starts[s]:
            al = alpha8[i:i + 1, :]                          # (1, Bt), sublane-broadcast
            Xi = Xp[i]
            Xj = Xp[i + 1]
            d = al * (Xi - Xj)
            Xp[i] = Xj + d
            Xp[i + 1] = Xi - d

    # ground-truth permutation: one_hot(argsort(-labels, -1)).transpose(-2, -1),
    # implemented as rank-by-counting (ties broken by original index; matches argsort for
    # distinct labels - duplicate labels may differ from torch.argsort's unspecified order)
    neg = -labels_ref[...].astype(f32)                       # (N, Bt)
    rank = jnp.zeros((N, Bt), jnp.int32)
    for k in range(1, N):
        rolled = jnp.roll(neg, k, axis=0)                    # rolled[o] = neg[(o-k) % N]
        j_lt_o = pos_b >= k                                  # (o-k) % N < o  <=>  o >= k
        less = (rolled < neg) | ((rolled == neg) & j_lt_o)
        rank = rank + less.astype(jnp.int32)

    # BCE with torch.nn.BCELoss's -100 log clamp, select-before-log (exact for gt in {0,1}):
    #   term(o,p) = -max(log(gt ? prob : 1-prob), -100)   -> one EUP log per p
    acc = jnp.zeros((N, Bt), f32)
    for p in range(N):
        prob = jnp.clip(Xp[p], 0.0, 1.0)                     # guard fp overshoot outside [0,1]
        q = jnp.where(rank == p, prob, 1.0 - prob)
        acc = acc - jnp.maximum(jnp.log(q), -100.0)

    # fold the 8 original-index rows on-chip: one lane-dense row per block (8x less writeback)
    out_ref[...] = jnp.sum(acc, axis=0, keepdims=True)       # (1, Bt)


def make_pure_diffsort_loss(size=SIZE, max_b_tile=256):
    @jax.jit
    def loss_fn(pred_scores, labels):
        B, n = pred_scores.shape
        assert n == size
        # Tile selection: big lane tiles amortize the ~0.35us per-grid-step overhead, but keep
        # >= 2 blocks whenever the batch allows so v7x's two TensorCores both get work.
        b_tile = max_b_tile if B > max_b_tile else 128
        n_blocks = max(1, -(-B // b_tile))
        Bp = n_blocks * b_tile
        # layout plumbing: batch onto the lane axis, padded with jnp.pad (fusible)
        pred_t = jnp.pad(pred_scores.astype(jnp.float32).T, ((0, 0), (0, Bp - B)))
        lab_t = jnp.pad(labels.astype(jnp.float32).T, ((0, 0), (0, Bp - B)))
        partial = pl.pallas_call(
            _diffsort_loss_kernel,
            out_shape=jax.ShapeDtypeStruct((1, Bp), jnp.float32),
            grid=(n_blocks,),
            in_specs=[pl.BlockSpec((n, b_tile), lambda i: (0, i)),
                      pl.BlockSpec((n, b_tile), lambda i: (0, i))],
            out_specs=pl.BlockSpec((1, b_tile), lambda i: (0, i)),
            compiler_params=pltpu.CompilerParams(
                dimension_semantics=("parallel",)),
            cost_estimate=pl.CostEstimate(
                flops=int(Bp) * 4500,
                transcendentals=int(Bp) * 130,
                bytes_accessed=int(Bp) * (2 * n + 1) * 4),
        )(pred_t, lab_t)
        # padded columns are sliced away before the mean
        return jnp.sum(partial[0, :B]) / jnp.float32(B * size * size)

    return loss_fn


# ----------------------------------------------------------------------------------------
# Pure-JAX reference (diffsort split/combine-matrix formulation), used only for checking.
# ----------------------------------------------------------------------------------------
def build_odd_even_network(n):
    K = n // 2 + 1
    L = n
    SA = np.zeros((L, K, n), np.float32)
    SB = np.zeros((L, K, n), np.float32)
    CMIN = np.zeros((L, n, K), np.float32)
    CMAX = np.zeros((L, n, K), np.float32)
    shifted = False
    for layer in range(L):
        count = 0
        if shifted:
            SA[layer, count, 0] = 1.0
            SB[layer, count, 0] = 1.0
            CMIN[layer, 0, count] = 0.5
            CMAX[layer, 0, count] = 0.5
            count += 1
        for i in range(int(shifted), n - 1, 2):
            SA[layer, count, i] = 1.0
            SB[layer, count, i + 1] = 1.0
            CMIN[layer, i, count] = 1.0
            CMAX[layer, i + 1, count] = 1.0
            count += 1
        if (n % 2 == 1 and not shifted) or (n % 2 == 0 and shifted):
            SA[layer, count, n - 1] = 1.0
            SB[layer, count, n - 1] = 1.0
            CMIN[layer, n - 1, count] = 0.5
            CMAX[layer, n - 1, count] = 0.5
            count += 1
        shifted = not shifted
    SA_T = np.ascontiguousarray(SA.transpose(0, 2, 1))
    SB_T = np.ascontiguousarray(SB.transpose(0, 2, 1))
    CMIN_T = np.ascontiguousarray(CMIN.transpose(0, 2, 1))
    CMAX_T = np.ascontiguousarray(CMAX.transpose(0, 2, 1))
    return SA_T, SB_T, CMIN_T, CMAX_T


def reference_loss(pred_scores, labels, size=SIZE):
    sa, sb, cmn, cmx = (jnp.asarray(m) for m in build_odd_even_network(size))
    hp = jax.lax.Precision.HIGHEST
    x = -pred_scores.astype(jnp.float32)
    B, N = x.shape
    X = jnp.broadcast_to(jnp.eye(N, dtype=jnp.float32), (B, N, N))
    for l in range(sa.shape[0]):
        a = jnp.dot(x, sa[l], precision=hp)
        b = jnp.dot(x, sb[l], precision=hp)
        alpha = jnp.arctan(STEEPNESS * (b - a)) / math.pi + 0.5
        aX = jnp.einsum('bon,nk->bok', X, sa[l], precision=hp)
        bX = jnp.einsum('bon,nk->bok', X, sb[l], precision=hp)
        al = alpha[:, None, :]
        w_min = al * aX + (1.0 - al) * bX
        w_max = (1.0 - al) * aX + al * bX
        X = (jnp.einsum('bok,kn->bon', w_max, cmx[l], precision=hp)
             + jnp.einsum('bok,kn->bon', w_min, cmn[l], precision=hp))
        x = (jnp.dot(alpha * a + (1.0 - alpha) * b, cmn[l], precision=hp)
             + jnp.dot((1.0 - alpha) * a + alpha * b, cmx[l], precision=hp))
    order = jnp.argsort(-labels, axis=-1)
    gt = jnp.transpose(jax.nn.one_hot(order, N, dtype=jnp.float32), (0, 2, 1))
    log_p = jnp.maximum(jnp.log(X), -100.0)
    log_1mp = jnp.maximum(jnp.log(1.0 - X), -100.0)
    return jnp.mean(-(gt * log_p + (1.0 - gt) * log_1mp))


if __name__ == "__main__":
    key = jax.random.PRNGKey(0)
    loss_fn = make_pure_diffsort_loss(SIZE)

    # small case matching the module defaults (batch=2, size=8): 1 block of 128 lanes
    k1, k2 = jax.random.split(key)
    pred_scores = jax.random.normal(k1, (2, SIZE), dtype=jnp.float32)
    labels = jax.random.normal(k2, (2, SIZE), dtype=jnp.float32)
    loss = loss_fn(pred_scores, labels)
    jax.block_until_ready(loss)
    ref = reference_loss(pred_scores, labels, SIZE)
    np.testing.assert_allclose(np.asarray(loss), np.asarray(ref), rtol=1e-3, atol=1e-3)

    # multi-block grid + batch-padding path (2 grid steps of 256 lanes on the parallel axis)
    k3, k4 = jax.random.split(k1)
    pred_b = jax.random.normal(k3, (300, SIZE), dtype=jnp.float32)
    lab_b = jax.random.normal(k4, (300, SIZE), dtype=jnp.float32)
    loss_b = loss_fn(pred_b, lab_b)
    jax.block_until_ready(loss_b)
    ref_b = reference_loss(pred_b, lab_b, SIZE)
    np.testing.assert_allclose(np.asarray(loss_b), np.asarray(ref_b), rtol=1e-3, atol=1e-3)

    print("KERNEL_OK")
</pallas_src>

<mosaic_0001>
module attributes {stable_mosaic.version = 11 : i64} {
  func.func @_diffsort_loss_kernel(%arg0: i32, %arg1: memref<8x128xf32, #tpu.memory_space<vmem>>, %arg2: memref<8x128xf32, #tpu.memory_space<vmem>>, %arg3: memref<1x128xf32, #tpu.memory_space<vmem>>) attributes {dimension_semantics = [#tpu.dimension_semantics<parallel>], iteration_bounds = array<i64: 1>, scalar_prefetch = 0 : i64, scratch_operands = 0 : i64, tpu.core_type = #tpu.core_type<tc>, window_params = [{transform_indices = @transform_0, window_bounds = array<i64: 8, 128>}, {transform_indices = @transform_1, window_bounds = array<i64: 8, 128>}, {transform_indices = @transform_2, window_bounds = array<i64: 1, 128>}]} {
    %c0 = arith.constant 0 : index
    %c0_0 = arith.constant 0 : index
    %0 = vector.load %arg1[%c0, %c0_0] : memref<8x128xf32, #tpu.memory_space<vmem>>, vector<8x128xf32>
    %cst = arith.constant 0.000000e+00 : f32
    %1 = vector.broadcast %cst : f32 to vector<8x128xf32>
    %2 = arith.subf %1, %0 : vector<8x128xf32>
    %3 = tpu.iota {dimensions = array<i32: 0>} : vector<8x128xi32>
    %c1_i32 = arith.constant 1 : i32
    %4 = vector.broadcast %c1_i32 : i32 to vector<8x128xi32>
    %5 = arith.andi %3, %4 : vector<8x128xi32>
    %c1_i32_1 = arith.constant 1 : i32
    %6 = vector.broadcast %c1_i32_1 : i32 to vector<8x128xi32>
    %7 = arith.cmpi eq, %5, %6 : vector<8x128xi32>
    %cst_2 = arith.constant dense<true> : vector<8x128xi1>
    %8 = arith.xori %7, %cst_2 : vector<8x128xi1>
    %c7_i32 = arith.constant 7 : i32
    %9 = vector.broadcast %c7_i32 : i32 to vector<8x128xi32>
    %10 = arith.cmpi slt, %3, %9 : vector<8x128xi32>
    %11 = arith.andi %7, %10 : vector<8x128xi1>
    %cst_3 = arith.constant dense<true> : vector<8x128xi1>
    %12 = arith.xori %7, %cst_3 : vector<8x128xi1>
    %c0_i32 = arith.constant 0 : i32
    %13 = vector.broadcast %c0_i32 : i32 to vector<8x128xi32>
    %14 = arith.cmpi sgt, %3, %13 : vector<8x128xi32>
    %15 = arith.andi %12, %14 : vector<8x128xi1>
    %c7_i32_4 = arith.constant 7 : i32
    %16 = vector.broadcast %c7_i32_4 : i32 to vector<8x128xi32>
    %17 = arith.cmpi slt, %3, %16 : vector<8x128xi32>
    %18 = arith.andi %15, %17 : vector<8x128xi1>
    %c0_i32_5 = arith.constant 0 : i32
    %19 = vector.broadcast %c0_i32_5 : i32 to vector<8x128xi32>
    %20 = arith.cmpi eq, %3, %19 : vector<8x128xi32>
    %21 = arith.extui %20 : vector<8x128xi1> to vector<8x128xi32>
    %22 = arith.sitofp %21 : vector<8x128xi32> to vector<8x128xf32>
    %c1_i32_6 = arith.constant 1 : i32
    %23 = vector.broadcast %c1_i32_6 : i32 to vector<8x128xi32>
    %24 = arith.cmpi eq, %3, %23 : vector<8x128xi32>
    %25 = arith.extui %24 : vector<8x128xi1> to vector<8x128xi32>
    %26 = arith.sitofp %25 : vector<8x128xi32> to vector<8x128xf32>
    %c2_i32 = arith.constant 2 : i32
    %27 = vector.broadcast %c2_i32 : i32 to vector<8x128xi32>
    %28 = arith.cmpi eq, %3, %27 : vector<8x128xi32>
    %29 = arith.extui %28 : vector<8x128xi1> to vector<8x128xi32>
    %30 = arith.sitofp %29 : vector<8x128xi32> to vector<8x128xf32>
    %c3_i32 = arith.constant 3 : i32
    %31 = vector.broadcast %c3_i32 : i32 to vector<8x128xi32>
    %32 = arith.cmpi eq, %3, %31 : vector<8x128xi32>
    %33 = arith.extui %32 : vector<8x128xi1> to vector<8x128xi32>
    %34 = arith.sitofp %33 : vector<8x128xi32> to vector<8x128xf32>
    %c4_i32 = arith.constant 4 : i32
    %35 = vector.broadcast %c4_i32 : i32 to vector<8x128xi32>
    %36 = arith.cmpi eq, %3, %35 : vector<8x128xi32>
    %37 = arith.extui %36 : vector<8x128xi1> to vector<8x128xi32>
    %38 = arith.sitofp %37 : vector<8x128xi32> to vector<8x128xf32>
    %c5_i32 = arith.constant 5 : i32
    %39 = vector.broadcast %c5_i32 : i32 to vector<8x128xi32>
    %40 = arith.cmpi eq, %3, %39 : vector<8x128xi32>
    %41 = arith.extui %40 : vector<8x128xi1> to vector<8x128xi32>
    %42 = arith.sitofp %41 : vector<8x128xi32> to vector<8x128xf32>
    %c6_i32 = arith.constant 6 : i32
    %43 = vector.broadcast %c6_i32 : i32 to vector<8x128xi32>
    %44 = arith.cmpi eq, %3, %43 : vector<8x128xi32>
    %45 = arith.extui %44 : vector<8x128xi1> to vector<8x128xi32>
    %46 = arith.sitofp %45 : vector<8x128xi32> to vector<8x128xf32>
    %c7_i32_7 = arith.constant 7 : i32
    %47 = vector.broadcast %c7_i32_7 : i32 to vector<8x128xi32>
    %48 = arith.cmpi eq, %3, %47 : vector<8x128xi32>
    %49 = arith.extui %48 : vector<8x128xi1> to vector<8x128xi32>
    %50 = arith.sitofp %49 : vector<8x128xi32> to vector<8x128xf32>
    %51 = vector.extract_strided_slice %2 {offsets = [1, 0], sizes = [7, 128], strides = [1, 1]} : vector<8x128xf32> to vector<7x128xf32>
    %52 = vector.extract_strided_slice %2 {offsets = [0, 0], sizes = [1, 128], strides = [1, 1]} : vector<8x128xf32> to vector<1x128xf32>
    %53 = tpu.concatenate %51, %52 in 0 : vector<7x128xf32>, vector<1x128xf32> -> vector<8x128xf32>
    %54 = vector.extract_strided_slice %2 {offsets = [7, 0], sizes = [1, 128], strides = [1, 1]} : vector<8x128xf32> to vector<1x128xf32>
    %55 = vector.extract_strided_slice %2 {offsets = [0, 0], sizes = [7, 128], strides = [1, 1]} : vector<8x128xf32> to vector<7x128xf32>
    %56 = tpu.concatenate %54, %55 in 0 : vector<1x128xf32>, vector<7x128xf32> -> vector<8x128xf32>
    %57 = arith.subf %53, %2 : vector<8x128xf32>
    %58 = arith.subf %2, %56 : vector<8x128xf32>
    %59 = arith.select %8, %57, %58 : vector<8x128xi1>, vector<8x128xf32>
    %cst_8 = arith.constant 1.000000e+01 : f32
    %60 = vector.broadcast %cst_8 : f32 to vector<8x128xf32>
    %61 = arith.mulf %60, %59 : vector<8x128xf32>
    %cst_9 = arith.constant 0.000000e+00 : f32
    %62 = vector.broadcast %cst_9 : f32 to vector<8x128xf32>
    %63 = arith.cmpf oge, %61, %62 : vector<8x128xf32>
    %cst_10 = arith.constant 1.000000e+00 : f32
    %cst_11 = arith.constant -1.000000e+00 : f32
    %64 = vector.broadcast %cst_10 : f32 to vector<8x128xf32>
    %65 = vector.broadcast %cst_11 : f32 to vector<8x128xf32>
    %66 = arith.select %63, %64, %65 : vector<8x128xi1>, vector<8x128xf32>
    %67 = math.absf %61 : vector<8x128xf32>
    %cst_12 = arith.constant 1.000000e+00 : f32
    %68 = vector.broadcast %cst_12 : f32 to vector<8x128xf32>
    %69 = arith.cmpf ogt, %67, %68 : vector<8x128xf32>
    %cst_13 = arith.constant 1.000000e+00 : f32
    %70 = vector.broadcast %cst_13 : f32 to vector<8x128xf32>
    %71 = arith.maximumf %67, %70 : vector<8x128xf32>
    %72 = tpu.reciprocal %71 {approx = true} : vector<8x128xf32> -> vector<8x128xf32>
    %73 = arith.mulf %71, %72 : vector<8x128xf32>
    %cst_14 = arith.constant 2.000000e+00 : f32
    %74 = vector.broadcast %cst_14 : f32 to vector<8x128xf32>
    %75 = arith.subf %74, %73 : vector<8x128xf32>
    %76 = arith.mulf %72, %75 : vector<8x128xf32>
    %77 = arith.mulf %71, %76 : vector<8x128xf32>
    %cst_15 = arith.constant 2.000000e+00 : f32
    %78 = vector.broadcast %cst_15 : f32 to vector<8x128xf32>
    %79 = arith.subf %78, %77 : vector<8x128xf32>
    %80 = arith.mulf %76, %79 : vector<8x128xf32>
    %81 = arith.select %69, %80, %67 : vector<8x128xi1>, vector<8x128xf32>
    %82 = arith.mulf %81, %81 : vector<8x128xf32>
    %cst_16 = arith.constant -0.0039602574 : f32
    %83 = vector.broadcast %cst_16 : f32 to vector<8x128xf32>
    %84 = arith.mulf %83, %82 : vector<8x128xf32>
    %cst_17 = arith.constant 0.0215092544 : f32
    %85 = vector.broadcast %cst_17 : f32 to vector<8x128xf32>
    %86 = arith.addf %84, %85 : vector<8x128xf32>
    %87 = arith.mulf %86, %82 : vector<8x128xf32>
    %cst_18 = arith.constant -0.0553816967 : f32
    %88 = vector.broadcast %cst_18 : f32 to vector<8x128xf32>
    %89 = arith.addf %87, %88 : vector<8x128xf32>
    %90 = arith.mulf %89, %82 : vector<8x128xf32>
    %cst_19 = arith.constant 0.0960165634 : f32
    %91 = vector.broadcast %cst_19 : f32 to vector<8x128xf32>
    %92 = arith.addf %90, %91 : vector<8x128xf32>
    %93 = arith.mulf %92, %82 : vector<8x128xf32>
    %cst_20 = arith.constant -0.138920411 : f32
    %94 = vector.broadcast %cst_20 : f32 to vector<8x128xf32>
    %95 = arith.addf %93, %94 : vector<8x128xf32>
    %96 = arith.mulf %95, %82 : vector<8x128xf32>
    %cst_21 = arith.constant 0.199430808 : f32
    %97 = vector.broadcast %cst_21 : f32 to vector<8x128xf32>
    %98 = arith.addf %96, %97 : vector<8x128xf32>
    %99 = arith.mulf %98, %82 : vector<8x128xf32>
    %cst_22 = arith.constant -0.333295375 : f32
    %100 = vector.broadcast %cst_22 : f32 to vector<8x128xf32>
    %101 = arith.addf %99, %100 : vector<8x128xf32>
    %102 = arith.mulf %101, %82 : vector<8x128xf32>
    %cst_23 = arith.constant 0.999999225 : f32
    %103 = vector.broadcast %cst_23 : f32 to vector<8x128xf32>
    %104 = arith.addf %102, %103 : vector<8x128xf32>
    %105 = arith.mulf %81, %104 : vector<8x128xf32>
    %cst_24 = arith.constant 1.57079637 : f32
    %106 = vector.broadcast %cst_24 : f32 to vector<8x128xf32>
    %107 = arith.subf %106, %105 : vector<8x128xf32>
    %108 = arith.select %69, %107, %105 : vector<8x128xi1>, vector<8x128xf32>
    %109 = arith.mulf %66, %108 : vector<8x128xf32>
    %cst_25 = arith.constant 0.318309873 : f32
    %110 = vector.broadcast %cst_25 : f32 to vector<8x128xf32>
    %111 = arith.mulf %109, %110 : vector<8x128xf32>
    %cst_26 = arith.constant 5.000000e-01 : f32
    %112 = vector.broadcast %cst_26 : f32 to vector<8x128xf32>
    %113 = arith.addf %111, %112 : vector<8x128xf32>
    %114 = arith.mulf %113, %59 : vector<8x128xf32>
    %115 = arith.subf %53, %114 : vector<8x128xf32>
    %116 = arith.addf %56, %114 : vector<8x128xf32>
    %117 = arith.select %8, %115, %116 : vector<8x128xi1>, vector<8x128xf32>
    %118 = vector.extract_strided_slice %113 {offsets = [0, 0], sizes = [1, 128], strides = [1, 1]} : vector<8x128xf32> to vector<1x128xf32>
    %119 = arith.subf %22, %26 : vector<8x128xf32>
    %120 = vector.broadcast %118 : vector<1x128xf32> to vector<8x128xf32>
    %121 = arith.mulf %120, %119 : vector<8x128xf32>
    %122 = arith.addf %26, %121 : vector<8x128xf32>
    %123 = arith.subf %22, %121 : vector<8x128xf32>
    %124 = vector.extract_strided_slice %113 {offsets = [2, 0], sizes = [1, 128], strides = [1, 1]} : vector<8x128xf32> to vector<1x128xf32>
    %125 = arith.subf %30, %34 : vector<8x128xf32>
    %126 = vector.broadcast %124 : vector<1x128xf32> to vector<8x128xf32>
    %127 = arith.mulf %126, %125 : vector<8x128xf32>
    %128 = arith.addf %34, %127 : vector<8x128xf32>
    %129 = arith.subf %30, %127 : vector<8x128xf32>
    %130 = vector.extract_strided_slice %113 {offsets = [4, 0], sizes = [1, 128], strides = [1, 1]} : vector<8x128xf32> to vector<1x128xf32>
    %131 = arith.subf %38, %42 : vector<8x128xf32>
    %132 = vector.broadcast %130 : vector<1x128xf32> to vector<8x128xf32>
    %133 = arith.mulf %132, %131 : vector<8x128xf32>
    %134 = arith.addf %42, %133 : vector<8x128xf32>
    %135 = arith.subf %38, %133 : vector<8x128xf32>
    %136 = vector.extract_strided_slice %113 {offsets = [6, 0], sizes = [1, 128], strides = [1, 1]} : vector<8x128xf32> to vector<1x128xf32>
    %137 = arith.subf %46, %50 : vector<8x128xf32>
    %138 = vector.broadcast %136 : vector<1x128xf32> to vector<8x128xf32>
    %139 = arith.mulf %138, %137 : vector<8x128xf32>
    %140 = arith.addf %50, %139 : vector<8x128xf32>
    %141 = arith.subf %46, %139 : vector<8x128xf32>
    %142 = vector.extract_strided_slice %117 {offsets = [1, 0], sizes = [7, 128], strides = [1, 1]} : vector<8x128xf32> to vector<7x128xf32>
    %143 = vector.extract_strided_slice %117 {offsets = [0, 0], sizes = [1, 128], strides = [1, 1]} : vector<8x128xf32> to vector<1x128xf32>
    %144 = tpu.concatenate %142, %143 in 0 : vector<7x128xf32>, vector<1x128xf32> -> vector<8x128xf32>
    %145 = vector.extract_strided_slice %117 {offsets = [7, 0], sizes = [1, 128], strides = [1, 1]} : vector<8x128xf32> to vector<1x128xf32>
    %146 = vector.extract_strided_slice %117 {offsets = [0, 0], sizes = [7, 128], strides = [1, 1]} : vector<8x128xf32> to vector<7x128xf32>
    %147 = tpu.concatenate %145, %146 in 0 : vector<1x128xf32>, vector<7x128xf32> -> vector<8x128xf32>
    %148 = arith.subf %144, %117 : vector<8x128xf32>
    %149 = arith.subf %117, %147 : vector<8x128xf32>
    %150 = arith.select %11, %148, %149 : vector<8x128xi1>, vector<8x128xf32>
    %cst_27 = arith.constant 1.000000e+01 : f32
    %151 = vector.broadcast %cst_27 : f32 to vector<8x128xf32>
    %152 = arith.mulf %151, %150 : vector<8x128xf32>
    %cst_28 = arith.constant 0.000000e+00 : f32
    %153 = vector.broadcast %cst_28 : f32 to vector<8x128xf32>
    %154 = arith.cmpf oge, %152, %153 : vector<8x128xf32>
    %cst_29 = arith.constant 1.000000e+00 : f32
    %cst_30 = arith.constant -1.000000e+00 : f32
    %155 = vector.broadcast %cst_29 : f32 to vector<8x128xf32>
    %156 = vector.broadcast %cst_30 : f32 to vector<8x128xf32>
    %157 = arith.select %154, %155, %156 : vector<8x128xi1>, vector<8x128xf32>
    %158 = math.absf %152 : vector<8x128xf32>
    %cst_31 = arith.constant 1.000000e+00 : f32
    %159 = vector.broadcast %cst_31 : f32 to vector<8x128xf32>
    %160 = arith.cmpf ogt, %158, %159 : vector<8x128xf32>
    %cst_32 = arith.constant 1.000000e+00 : f32
    %161 = vector.broadcast %cst_32 : f32 to vector<8x128xf32>
    %162 = arith.maximumf %158, %161 : vector<8x128xf32>
    %163 = tpu.reciprocal %162 {approx = true} : vector<8x128xf32> -> vector<8x128xf32>
    %164 = arith.mulf %162, %163 : vector<8x128xf32>
    %cst_33 = arith.constant 2.000000e+00 : f32
    %165 = vector.broadcast %cst_33 : f32 to vector<8x128xf32>
    %166 = arith.subf %165, %164 : vector<8x128xf32>
    %167 = arith.mulf %163, %166 : vector<8x128xf32>
    %168 = arith.mulf %162, %167 : vector<8x128xf32>
    %cst_34 = arith.constant 2.000000e+00 : f32
    %169 = vector.broadcast %cst_34 : f32 to vector<8x128xf32>
    %170 = arith.subf %169, %168 : vector<8x128xf32>
    %171 = arith.mulf %167, %170 : vector<8x128xf32>
    %172 = arith.select %160, %171, %158 : vector<8x128xi1>, vector<8x128xf32>
    %173 = arith.mulf %172, %172 : vector<8x128xf32>
    %cst_35 = arith.constant -0.0039602574 : f32
    %174 = vector.broadcast %cst_35 : f32 to vector<8x128xf32>
    %175 = arith.mulf %174, %173 : vector<8x128xf32>
    %cst_36 = arith.constant 0.0215092544 : f32
    %176 = vector.broadcast %cst_36 : f32 to vector<8x128xf32>
    %177 = arith.addf %175, %176 : vector<8x128xf32>
    %178 = arith.mulf %177, %173 : vector<8x128xf32>
    %cst_37 = arith.constant -0.0553816967 : f32
    %179 = vector.broadcast %cst_37 : f32 to vector<8x128xf32>
    %180 = arith.addf %178, %179 : vector<8x128xf32>
    %181 = arith.mulf %180, %173 : vector<8x128xf32>
    %cst_38 = arith.constant 0.0960165634 : f32
    %182 = vector.broadcast %cst_38 : f32 to vector<8x128xf32>
    %183 = arith.addf %181, %182 : vector<8x128xf32>
    %184 = arith.mulf %183, %173 : vector<8x128xf32>
    %cst_39 = arith.constant -0.138920411 : f32
    %185 = vector.broadcast %cst_39 : f32 to vector<8x128xf32>
    %186 = arith.addf %184, %185 : vector<8x128xf32>
    %187 = arith.mulf %186, %173 : vector<8x128xf32>
    %cst_40 = arith.constant 0.199430808 : f32
    %188 = vector.broadcast %cst_40 : f32 to vector<8x128xf32>
    %189 = arith.addf %187, %188 : vector<8x128xf32>
    %190 = arith.mulf %189, %173 : vector<8x128xf32>
    %cst_41 = arith.constant -0.333295375 : f32
    %191 = vector.broadcast %cst_41 : f32 to vector<8x128xf32>
    %192 = arith.addf %190, %191 : vector<8x128xf32>
    %193 = arith.mulf %192, %173 : vector<8x128xf32>
    %cst_42 = arith.constant 0.999999225 : f32
    %194 = vector.broadcast %cst_42 : f32 to vector<8x128xf32>
    %195 = arith.addf %193, %194 : vector<8x128xf32>
    %196 = arith.mulf %172, %195 : vector<8x128xf32>
    %cst_43 = arith.constant 1.57079637 : f32
    %197 = vector.broadcast %cst_43 : f32 to vector<8x128xf32>
    %198 = arith.subf %197, %196 : vector<8x128xf32>
    %199 = arith.select %160, %198, %196 : vector<8x128xi1>, vector<8x128xf32>
    %200 = arith.mulf %157, %199 : vector<8x128xf32>
    %cst_44 = arith.constant 0.318309873 : f32
    %201 = vector.broadcast %cst_44 : f32 to vector<8x128xf32>
    %202 = arith.mulf %200, %201 : vector<8x128xf32>
    %cst_45 = arith.constant 5.000000e-01 : f32
    %203 = vector.broadcast %cst_45 : f32 to vector<8x128xf32>
    %204 = arith.addf %202, %203 : vector<8x128xf32>
    %205 = arith.mulf %204, %150 : vector<8x128xf32>
    %206 = arith.subf %144, %205 : vector<8x128xf32>
    %207 = arith.addf %147, %205 : vector<8x128xf32>
    %208 = arith.select %18, %207, %117 : vector<8x128xi1>, vector<8x128xf32>
    %209 = arith.select %11, %206, %208 : vector<8x128xi1>, vector<8x128xf32>
    %210 = vector.extract_strided_slice %204 {offsets = [1, 0], sizes = [1, 128], strides = [1, 1]} : vector<8x128xf32> to vector<1x128xf32>
    %211 = arith.subf %123, %128 : vector<8x128xf32>
    %212 = vector.broadcast %210 : vector<1x128xf32> to vector<8x128xf32>
    %213 = arith.mulf %212, %211 : vector<8x128xf32>
    %214 = arith.addf %128, %213 : vector<8x128xf32>
    %215 = arith.subf %123, %213 : vector<8x128xf32>
    %216 = vector.extract_strided_slice %204 {offsets = [3, 0], sizes = [1, 128], strides = [1, 1]} : vector<8x128xf32> to vector<1x128xf32>
    %217 = arith.subf %129, %134 : vector<8x128xf32>
    %218 = vector.broadcast %216 : vector<1x128xf32> to vector<8x128xf32>
    %219 = arith.mulf %218, %217 : vector<8x128xf32>
    %220 = arith.addf %134, %219 : vector<8x128xf32>
    %221 = arith.subf %129, %219 : vector<8x128xf32>
    %222 = vector.extract_strided_slice %204 {offsets = [5, 0], sizes = [1, 128], strides = [1, 1]} : vector<8x128xf32> to vector<1x128xf32>
    %223 = arith.subf %135, %140 : vector<8x128xf32>
    %224 = vector.broadcast %222 : vector<1x128xf32> to vector<8x128xf32>
    %225 = arith.mulf %224, %223 : vector<8x128xf32>
    %226 = arith.addf %140, %225 : vector<8x128xf32>
    %227 = arith.subf %135, %225 : vector<8x128xf32>
    %228 = vector.extract_strided_slice %209 {offsets = [1, 0], sizes = [7, 128], strides = [1, 1]} : vector<8x128xf32> to vector<7x128xf32>
    %229 = vector.extract_strided_slice %209 {offsets = [0, 0], sizes = [1, 128], strides = [1, 1]} : vector<8x128xf32> to vector<1x128xf32>
    %230 = tpu.concatenate %228, %229 in 0 : vector<7x128xf32>, vector<1x128xf32> -> vector<8x128xf32>
    %231 = vector.extract_strided_slice %209 {offsets = [7, 0], sizes = [1, 128], strides = [1, 1]} : vector<8x128xf32> to vector<1x128xf32>
    %232 = vector.extract_strided_slice %209 {offsets = [0, 0], sizes = [7, 128], strides = [1, 1]} : vector<8x128xf32> to vector<7x128xf32>
    %233 = tpu.concatenate %231, %232 in 0 : vector<1x128xf32>, vector<7x128xf32> -> vector<8x128xf32>
    %234 = arith.subf %230, %209 : vector<8x128xf32>
    %235 = arith.subf %209, %233 : vector<8x128xf32>
    %236 = arith.select %8, %234, %235 : vector<8x128xi1>, vector<8x128xf32>
    %cst_46 = arith.constant 1.000000e+01 : f32
    %237 = vector.broadcast %cst_46 : f32 to vector<8x128xf32>
    %238 = arith.mulf %237, %236 : vector<8x128xf32>
    %cst_47 = arith.constant 0.000000e+00 : f32
    %239 = vector.broadcast %cst_47 : f32 to vector<8x128xf32>
    %240 = arith.cmpf oge, %238, %239 : vector<8x128xf32>
    %cst_48 = arith.constant 1.000000e+00 : f32
    %cst_49 = arith.constant -1.000000e+00 : f32
    %241 = vector.broadcast %cst_48 : f32 to vector<8x128xf32>
    %242 = vector.broadcast %cst_49 : f32 to vector<8x128xf32>
    %243 = arith.select %240, %241, %242 : vector<8x128xi1>, vector<8x128xf32>
    %244 = math.absf %238 : vector<8x128xf32>
    %cst_50 = arith.constant 1.000000e+00 : f32
    %245 = vector.broadcast %cst_50 : f32 to vector<8x128xf32>
    %246 = arith.cmpf ogt, %244, %245 : vector<8x128xf32>
    %cst_51 = arith.constant 1.000000e+00 : f32
    %247 = vector.broadcast %cst_51 : f32 to vector<8x128xf32>
    %248 = arith.maximumf %244, %247 : vector<8x128xf32>
    %249 = tpu.reciprocal %248 {approx = true} : vector<8x128xf32> -> vector<8x128xf32>
    %250 = arith.mulf %248, %249 : vector<8x128xf32>
    %cst_52 = arith.constant 2.000000e+00 : f32
    %251 = vector.broadcast %cst_52 : f32 to vector<8x128xf32>
    %252 = arith.subf %251, %250 : vector<8x128xf32>
    %253 = arith.mulf %249, %252 : vector<8x128xf32>
    %254 = arith.mulf %248, %253 : vector<8x128xf32>
    %cst_53 = arith.constant 2.000000e+00 : f32
    %255 = vector.broadcast %cst_53 : f32 to vector<8x128xf32>
    %256 = arith.subf %255, %254 : vector<8x128xf32>
    %257 = arith.mulf %253, %256 : vector<8x128xf32>
    %258 = arith.select %246, %257, %244 : vector<8x128xi1>, vector<8x128xf32>
    %259 = arith.mulf %258, %258 : vector<8x128xf32>
    %cst_54 = arith.constant -0.0039602574 : f32
    %260 = vector.broadcast %cst_54 : f32 to vector<8x128xf32>
    %261 = arith.mulf %260, %259 : vector<8x128xf32>
    %cst_55 = arith.constant 0.0215092544 : f32
    %262 = vector.broadcast %cst_55 : f32 to vector<8x128xf32>
    %263 = arith.addf %261, %262 : vector<8x128xf32>
    %264 = arith.mulf %263, %259 : vector<8x128xf32>
    %cst_56 = arith.constant -0.0553816967 : f32
    %265 = vector.broadcast %cst_56 : f32 to vector<8x128xf32>
    %266 = arith.addf %264, %265 : vector<8x128xf32>
    %267 = arith.mulf %266, %259 : vector<8x128xf32>
    %cst_57 = arith.constant 0.0960165634 : f32
    %268 = vector.broadcast %cst_57 : f32 to vector<8x128xf32>
    %269 = arith.addf %267, %268 : vector<8x128xf32>
    %270 = arith.mulf %269, %259 : vector<8x128xf32>
    %cst_58 = arith.constant -0.138920411 : f32
    %271 = vector.broadcast %cst_58 : f32 to vector<8x128xf32>
    %272 = arith.addf %270, %271 : vector<8x128xf32>
    %273 = arith.mulf %272, %259 : vector<8x128xf32>
    %cst_59 = arith.constant 0.199430808 : f32
    %274 = vector.broadcast %cst_59 : f32 to vector<8x128xf32>
    %275 = arith.addf %273, %274 : vector<8x128xf32>
    %276 = arith.mulf %275, %259 : vector<8x128xf32>
    %cst_60 = arith.constant -0.333295375 : f32
    %277 = vector.broadcast %cst_60 : f32 to vector<8x128xf32>
    %278 = arith.addf %276, %277 : vector<8x128xf32>
    %279 = arith.mulf %278, %259 : vector<8x128xf32>
    %cst_61 = arith.constant 0.999999225 : f32
    %280 = vector.broadcast %cst_61 : f32 to vector<8x128xf32>
    %281 = arith.addf %279, %280 : vector<8x128xf32>
    %282 = arith.mulf %258, %281 : vector<8x128xf32>
    %cst_62 = arith.constant 1.57079637 : f32
    %283 = vector.broadcast %cst_62 : f32 to vector<8x128xf32>
    %284 = arith.subf %283, %282 : vector<8x128xf32>
    %285 = arith.select %246, %284, %282 : vector<8x128xi1>, vector<8x128xf32>
    %286 = arith.mulf %243, %285 : vector<8x128xf32>
    %cst_63 = arith.constant 0.318309873 : f32
    %287 = vector.broadcast %cst_63 : f32 to vector<8x128xf32>
    %288 = arith.mulf %286, %287 : vector<8x128xf32>
    %cst_64 = arith.constant 5.000000e-01 : f32
    %289 = vector.broadcast %cst_64 : f32 to vector<8x128xf32>
    %290 = arith.addf %288, %289 : vector<8x128xf32>
    %291 = arith.mulf %290, %236 : vector<8x128xf32>
    %292 = arith.subf %230, %291 : vector<8x128xf32>
    %293 = arith.addf %233, %291 : vector<8x128xf32>
    %294 = arith.select %8, %292, %293 : vector<8x128xi1>, vector<8x128xf32>
    %295 = vector.extract_strided_slice %290 {offsets = [0, 0], sizes = [1, 128], strides = [1, 1]} : vector<8x128xf32> to vector<1x128xf32>
    %296 = arith.subf %122, %214 : vector<8x128xf32>
    %297 = vector.broadcast %295 : vector<1x128xf32> to vector<8x128xf32>
    %298 = arith.mulf %297, %296 : vector<8x128xf32>
    %299 = arith.addf %214, %298 : vector<8x128xf32>
    %300 = arith.subf %122, %298 : vector<8x128xf32>
    %301 = vector.extract_strided_slice %290 {offsets = [2, 0], sizes = [1, 128], strides = [1, 1]} : vector<8x128xf32> to vector<1x128xf32>
    %302 = arith.subf %215, %220 : vector<8x128xf32>
    %303 = vector.broadcast %301 : vector<1x128xf32> to vector<8x128xf32>
    %304 = arith.mulf %303, %302 : vector<8x128xf32>
    %305 = arith.addf %220, %304 : vector<8x128xf32>
    %306 = arith.subf %215, %304 : vector<8x128xf32>
    %307 = vector.extract_strided_slice %290 {offsets = [4, 0], sizes = [1, 128], strides = [1, 1]} : vector<8x128xf32> to vector<1x128xf32>
    %308 = arith.subf %221, %226 : vector<8x128xf32>
    %309 = vector.broadcast %307 : vector<1x128xf32> to vector<8x128xf32>
    %310 = arith.mulf %309, %308 : vector<8x128xf32>
    %311 = arith.addf %226, %310 : vector<8x128xf32>
    %312 = arith.subf %221, %310 : vector<8x128xf32>
    %313 = vector.extract_strided_slice %290 {offsets = [6, 0], sizes = [1, 128], strides = [1, 1]} : vector<8x128xf32> to vector<1x128xf32>
    %314 = arith.subf %227, %141 : vector<8x128xf32>
    %315 = vector.broadcast %313 : vector<1x128xf32> to vector<8x128xf32>
    %316 = arith.mulf %315, %314 : vector<8x128xf32>
    %317 = arith.addf %141, %316 : vector<8x128xf32>
    %318 = arith.subf %227, %316 : vector<8x128xf32>
    %319 = vector.extract_strided_slice %294 {offsets = [1, 0], sizes = [7, 128], strides = [1, 1]} : vector<8x128xf32> to vector<7x128xf32>
    %320 = vector.extract_strided_slice %294 {offsets = [0, 0], sizes = [1, 128], strides = [1, 1]} : vector<8x128xf32> to vector<1x128xf32>
    %321 = tpu.concatenate %319, %320 in 0 : vector<7x128xf32>, vector<1x128xf32> -> vector<8x128xf32>
    %322 = vector.extract_strided_slice %294 {offsets = [7, 0], sizes = [1, 128], strides = [1, 1]} : vector<8x128xf32> to vector<1x128xf32>
    %323 = vector.extract_strided_slice %294 {offsets = [0, 0], sizes = [7, 128], strides = [1, 1]} : vector<8x128xf32> to vector<7x128xf32>
    %324 = tpu.concatenate %322, %323 in 0 : vector<1x128xf32>, vector<7x128xf32> -> vector<8x128xf32>
    %325 = arith.subf %321, %294 : vector<8x128xf32>
    %326 = arith.subf %294, %324 : vector<8x128xf32>
    %327 = arith.select %11, %325, %326 : vector<8x128xi1>, vector<8x128xf32>
    %cst_65 = arith.constant 1.000000e+01 : f32
    %328 = vector.broadcast %cst_65 : f32 to vector<8x128xf32>
    %329 = arith.mulf %328, %327 : vector<8x128xf32>
    %cst_66 = arith.constant 0.000000e+00 : f32
    %330 = vector.broadcast %cst_66 : f32 to vector<8x128xf32>
    %331 = arith.cmpf oge, %329, %330 : vector<8x128xf32>
    %cst_67 = arith.constant 1.000000e+00 : f32
    %cst_68 = arith.constant -1.000000e+00 : f32
    %332 = vector.broadcast %cst_67 : f32 to vector<8x128xf32>
    %333 = vector.broadcast %cst_68 : f32 to vector<8x128xf32>
    %334 = arith.select %331, %332, %333 : vector<8x128xi1>, vector<8x128xf32>
    %335 = math.absf %329 : vector<8x128xf32>
    %cst_69 = arith.constant 1.000000e+00 : f32
    %336 = vector.broadcast %cst_69 : f32 to vector<8x128xf32>
    %337 = arith.cmpf ogt, %335, %336 : vector<8x128xf32>
    %cst_70 = arith.constant 1.000000e+00 : f32
    %338 = vector.broadcast %cst_70 : f32 to vector<8x128xf32>
    %339 = arith.maximumf %335, %338 : vector<8x128xf32>
    %340 = tpu.reciprocal %339 {approx = true} : vector<8x128xf32> -> vector<8x128xf32>
    %341 = arith.mulf %339, %340 : vector<8x128xf32>
    %cst_71 = arith.constant 2.000000e+00 : f32
    %342 = vector.broadcast %cst_71 : f32 to vector<8x128xf32>
    %343 = arith.subf %342, %341 : vector<8x128xf32>
    %344 = arith.mulf %340, %343 : vector<8x128xf32>
    %345 = arith.mulf %339, %344 : vector<8x128xf32>
    %cst_72 = arith.constant 2.000000e+00 : f32
    %346 = vector.broadcast %cst_72 : f32 to vector<8x128xf32>
    %347 = arith.subf %346, %345 : vector<8x128xf32>
    %348 = arith.mulf %344, %347 : vector<8x128xf32>
    %349 = arith.select %337, %348, %335 : vector<8x128xi1>, vector<8x128xf32>
    %350 = arith.mulf %349, %349 : vector<8x128xf32>
    %cst_73 = arith.constant -0.0039602574 : f32
    %351 = vector.broadcast %cst_73 : f32 to vector<8x128xf32>
    %352 = arith.mulf %351, %350 : vector<8x128xf32>
    %cst_74 = arith.constant 0.0215092544 : f32
    %353 = vector.broadcast %cst_74 : f32 to vector<8x128xf32>
    %354 = arith.addf %352, %353 : vector<8x128xf32>
    %355 = arith.mulf %354, %350 : vector<8x128xf32>
    %cst_75 = arith.constant -0.0553816967 : f32
    %356 = vector.broadcast %cst_75 : f32 to vector<8x128xf32>
    %357 = arith.addf %355, %356 : vector<8x128xf32>
    %358 = arith.mulf %357, %350 : vector<8x128xf32>
    %cst_76 = arith.constant 0.0960165634 : f32
    %359 = vector.broadcast %cst_76 : f32 to vector<8x128xf32>
    %360 = arith.addf %358, %359 : vector<8x128xf32>
    %361 = arith.mulf %360, %350 : vector<8x128xf32>
    %cst_77 = arith.constant -0.138920411 : f32
    %362 = vector.broadcast %cst_77 : f32 to vector<8x128xf32>
    %363 = arith.addf %361, %362 : vector<8x128xf32>
    %364 = arith.mulf %363, %350 : vector<8x128xf32>
    %cst_78 = arith.constant 0.199430808 : f32
    %365 = vector.broadcast %cst_78 : f32 to vector<8x128xf32>
    %366 = arith.addf %364, %365 : vector<8x128xf32>
    %367 = arith.mulf %366, %350 : vector<8x128xf32>
    %cst_79 = arith.constant -0.333295375 : f32
    %368 = vector.broadcast %cst_79 : f32 to vector<8x128xf32>
    %369 = arith.addf %367, %368 : vector<8x128xf32>
    %370 = arith.mulf %369, %350 : vector<8x128xf32>
    %cst_80 = arith.constant 0.999999225 : f32
    %371 = vector.broadcast %cst_80 : f32 to vector<8x128xf32>
    %372 = arith.addf %370, %371 : vector<8x128xf32>
    %373 = arith.mulf %349, %372 : vector<8x128xf32>
    %cst_81 = arith.constant 1.57079637 : f32
    %374 = vector.broadcast %cst_81 : f32 to vector<8x128xf32>
    %375 = arith.subf %374, %373 : vector<8x128xf32>
    %376 = arith.select %337, %375, %373 : vector<8x128xi1>, vector<8x128xf32>
    %377 = arith.mulf %334, %376 : vector<8x128xf32>
    %cst_82 = arith.constant 0.318309873 : f32
    %378 = vector.broadcast %cst_82 : f32 to vector<8x128xf32>
    %379 = arith.mulf %377, %378 : vector<8x128xf32>
    %cst_83 = arith.constant 5.000000e-01 : f32
    %380 = vector.broadcast %cst_83 : f32 to vector<8x128xf32>
    %381 = arith.addf %379, %380 : vector<8x128xf32>
    %382 = arith.mulf %381, %327 : vector<8x128xf32>
    %383 = arith.subf %321, %382 : vector<8x128xf32>
    %384 = arith.addf %324, %382 : vector<8x128xf32>
    %385 = arith.select %18, %384, %294 : vector<8x128xi1>, vector<8x128xf32>
    %386 = arith.select %11, %383, %385 : vector<8x128xi1>, vector<8x128xf32>
    %387 = vector.extract_strided_slice %381 {offsets = [1, 0], sizes = [1, 128], strides = [1, 1]} : vector<8x128xf32> to vector<1x128xf32>
    %388 = arith.subf %300, %305 : vector<8x128xf32>
    %389 = vector.broadcast %387 : vector<1x128xf32> to vector<8x128xf32>
    %390 = arith.mulf %389, %388 : vector<8x128xf32>
    %391 = arith.addf %305, %390 : vector<8x128xf32>
    %392 = arith.subf %300, %390 : vector<8x128xf32>
    %393 = vector.extract_strided_slice %381 {offsets = [3, 0], sizes = [1, 128], strides = [1, 1]} : vector<8x128xf32> to vector<1x128xf32>
    %394 = arith.subf %306, %311 : vector<8x128xf32>
    %395 = vector.broadcast %393 : vector<1x128xf32> to vector<8x128xf32>
    %396 = arith.mulf %395, %394 : vector<8x128xf32>
    %397 = arith.addf %311, %396 : vector<8x128xf32>
    %398 = arith.subf %306, %396 : vector<8x128xf32>
    %399 = vector.extract_strided_slice %381 {offsets = [5, 0], sizes = [1, 128], strides = [1, 1]} : vector<8x128xf32> to vector<1x128xf32>
    %400 = arith.subf %312, %317 : vector<8x128xf32>
    %401 = vector.broadcast %399 : vector<1x128xf32> to vector<8x128xf32>
    %402 = arith.mulf %401, %400 : vector<8x128xf32>
    %403 = arith.addf %317, %402 : vector<8x128xf32>
    %404 = arith.subf %312, %402 : vector<8x128xf32>
    %405 = vector.extract_strided_slice %386 {offsets = [1, 0], sizes = [7, 128], strides = [1, 1]} : vector<8x128xf32> to vector<7x128xf32>
    %406 = vector.extract_strided_slice %386 {offsets = [0, 0], sizes = [1, 128], strides = [1, 1]} : vector<8x128xf32> to vector<1x128xf32>
    %407 = tpu.concatenate %405, %406 in 0 : vector<7x128xf32>, vector<1x128xf32> -> vector<8x128xf32>
    %408 = vector.extract_strided_slice %386 {offsets = [7, 0], sizes = [1, 128], strides = [1, 1]} : vector<8x128xf32> to vector<1x128xf32>
    %409 = vector.extract_strided_slice %386 {offsets = [0, 0], sizes = [7, 128], strides = [1, 1]} : vector<8x128xf32> to vector<7x128xf32>
    %410 = tpu.concatenate %408, %409 in 0 : vector<1x128xf32>, vector<7x128xf32> -> vector<8x128xf32>
    %411 = arith.subf %407, %386 : vector<8x128xf32>
    %412 = arith.subf %386, %410 : vector<8x128xf32>
    %413 = arith.select %8, %411, %412 : vector<8x128xi1>, vector<8x128xf32>
    %cst_84 = arith.constant 1.000000e+01 : f32
    %414 = vector.broadcast %cst_84 : f32 to vector<8x128xf32>
    %415 = arith.mulf %414, %413 : vector<8x128xf32>
    %cst_85 = arith.constant 0.000000e+00 : f32
    %416 = vector.broadcast %cst_85 : f32 to vector<8x128xf32>
    %417 = arith.cmpf oge, %415, %416 : vector<8x128xf32>
    %cst_86 = arith.constant 1.000000e+00 : f32
    %cst_87 = arith.constant -1.000000e+00 : f32
    %418 = vector.broadcast %cst_86 : f32 to vector<8x128xf32>
    %419 = vector.broadcast %cst_87 : f32 to vector<8x128xf32>
    %420 = arith.select %417, %418, %419 : vector<8x128xi1>, vector<8x128xf32>
    %421 = math.absf %415 : vector<8x128xf32>
    %cst_88 = arith.constant 1.000000e+00 : f32
    %422 = vector.broadcast %cst_88 : f32 to vector<8x128xf32>
    %423 = arith.cmpf ogt, %421, %422 : vector<8x128xf32>
    %cst_89 = arith.constant 1.000000e+00 : f32
    %424 = vector.broadcast %cst_89 : f32 to vector<8x128xf32>
    %425 = arith.maximumf %421, %424 : vector<8x128xf32>
    %426 = tpu.reciprocal %425 {approx = true} : vector<8x128xf32> -> vector<8x128xf32>
    %427 = arith.mulf %425, %426 : vector<8x128xf32>
    %cst_90 = arith.constant 2.000000e+00 : f32
    %428 = vector.broadcast %cst_90 : f32 to vector<8x128xf32>
    %429 = arith.subf %428, %427 : vector<8x128xf32>
    %430 = arith.mulf %426, %429 : vector<8x128xf32>
    %431 = arith.mulf %425, %430 : vector<8x128xf32>
    %cst_91 = arith.constant 2.000000e+00 : f32
    %432 = vector.broadcast %cst_91 : f32 to vector<8x128xf32>
    %433 = arith.subf %432, %431 : vector<8x128xf32>
    %434 = arith.mulf %430, %433 : vector<8x128xf32>
    %435 = arith.select %423, %434, %421 : vector<8x128xi1>, vector<8x128xf32>
    %436 = arith.mulf %435, %435 : vector<8x128xf32>
    %cst_92 = arith.constant -0.0039602574 : f32
    %437 = vector.broadcast %cst_92 : f32 to vector<8x128xf32>
    %438 = arith.mulf %437, %436 : vector<8x128xf32>
    %cst_93 = arith.constant 0.0215092544 : f32
    %439 = vector.broadcast %cst_93 : f32 to vector<8x128xf32>
    %440 = arith.addf %438, %439 : vector<8x128xf32>
    %441 = arith.mulf %440, %436 : vector<8x128xf32>
    %cst_94 = arith.constant -0.0553816967 : f32
    %442 = vector.broadcast %cst_94 : f32 to vector<8x128xf32>
    %443 = arith.addf %441, %442 : vector<8x128xf32>
    %444 = arith.mulf %443, %436 : vector<8x128xf32>
    %cst_95 = arith.constant 0.0960165634 : f32
    %445 = vector.broadcast %cst_95 : f32 to vector<8x128xf32>
    %446 = arith.addf %444, %445 : vector<8x128xf32>
    %447 = arith.mulf %446, %436 : vector<8x128xf32>
    %cst_96 = arith.constant -0.138920411 : f32
    %448 = vector.broadcast %cst_96 : f32 to vector<8x128xf32>
    %449 = arith.addf %447, %448 : vector<8x128xf32>
    %450 = arith.mulf %449, %436 : vector<8x128xf32>
    %cst_97 = arith.constant 0.199430808 : f32
    %451 = vector.broadcast %cst_97 : f32 to vector<8x128xf32>
    %452 = arith.addf %450, %451 : vector<8x128xf32>
    %453 = arith.mulf %452, %436 : vector<8x128xf32>
    %cst_98 = arith.constant -0.333295375 : f32
    %454 = vector.broadcast %cst_98 : f32 to vector<8x128xf32>
    %455 = arith.addf %453, %454 : vector<8x128xf32>
    %456 = arith.mulf %455, %436 : vector<8x128xf32>
    %cst_99 = arith.constant 0.999999225 : f32
    %457 = vector.broadcast %cst_99 : f32 to vector<8x128xf32>
    %458 = arith.addf %456, %457 : vector<8x128xf32>
    %459 = arith.mulf %435, %458 : vector<8x128xf32>
    %cst_100 = arith.constant 1.57079637 : f32
    %460 = vector.broadcast %cst_100 : f32 to vector<8x128xf32>
    %461 = arith.subf %460, %459 : vector<8x128xf32>
    %462 = arith.select %423, %461, %459 : vector<8x128xi1>, vector<8x128xf32>
    %463 = arith.mulf %420, %462 : vector<8x128xf32>
    %cst_101 = arith.constant 0.318309873 : f32
    %464 = vector.broadcast %cst_101 : f32 to vector<8x128xf32>
    %465 = arith.mulf %463, %464 : vector<8x128xf32>
    %cst_102 = arith.constant 5.000000e-01 : f32
    %466 = vector.broadcast %cst_102 : f32 to vector<8x128xf32>
    %467 = arith.addf %465, %466 : vector<8x128xf32>
    %468 = arith.mulf %467, %413 : vector<8x128xf32>
    %469 = arith.subf %407, %468 : vector<8x128xf32>
    %470 = arith.addf %410, %468 : vector<8x128xf32>
    %471 = arith.select %8, %469, %470 : vector<8x128xi1>, vector<8x128xf32>
    %472 = vector.extract_strided_slice %467 {offsets = [0, 0], sizes = [1, 128], strides = [1, 1]} : vector<8x128xf32> to vector<1x128xf32>
    %473 = arith.subf %299, %391 : vector<8x128xf32>
    %474 = vector.broadcast %472 : vector<1x128xf32> to vector<8x128xf32>
    %475 = arith.mulf %474, %473 : vector<8x128xf32>
    %476 = arith.addf %391, %475 : vector<8x128xf32>
    %477 = arith.subf %299, %475 : vector<8x128xf32>
    %478 = vector.extract_strided_slice %467 {offsets = [2, 0], sizes = [1, 128], strides = [1, 1]} : vector<8x128xf32> to vector<1x128xf32>
    %479 = arith.subf %392, %397 : vector<8x128xf32>
    %480 = vector.broadcast %478 : vector<1x128xf32> to vector<8x128xf32>
    %481 = arith.mulf %480, %479 : vector<8x128xf32>
    %482 = arith.addf %397, %481 : vector<8x128xf32>
    %483 = arith.subf %392, %481 : vector<8x128xf32>
    %484 = vector.extract_strided_slice %467 {offsets = [4, 0], sizes = [1, 128], strides = [1, 1]} : vector<8x128xf32> to vector<1x128xf32>
    %485 = arith.subf %398, %403 : vector<8x128xf32>
    %486 = vector.broadcast %484 : vector<1x128xf32> to vector<8x128xf32>
    %487 = arith.mulf %486, %485 : vector<8x128xf32>
    %488 = arith.addf %403, %487 : vector<8x128xf32>
    %489 = arith.subf %398, %487 : vector<8x128xf32>
    %490 = vector.extract_strided_slice %467 {offsets = [6, 0], sizes = [1, 128], strides = [1, 1]} : vector<8x128xf32> to vector<1x128xf32>
    %491 = arith.subf %404, %318 : vector<8x128xf32>
    %492 = vector.broadcast %490 : vector<1x128xf32> to vector<8x128xf32>
    %493 = arith.mulf %492, %491 : vector<8x128xf32>
    %494 = arith.addf %318, %493 : vector<8x128xf32>
    %495 = arith.subf %404, %493 : vector<8x128xf32>
    %496 = vector.extract_strided_slice %471 {offsets = [1, 0], sizes = [7, 128], strides = [1, 1]} : vector<8x128xf32> to vector<7x128xf32>
    %497 = vector.extract_strided_slice %471 {offsets = [0, 0], sizes = [1, 128], strides = [1, 1]} : vector<8x128xf32> to vector<1x128xf32>
    %498 = tpu.concatenate %496, %497 in 0 : vector<7x128xf32>, vector<1x128xf32> -> vector<8x128xf32>
    %499 = vector.extract_strided_slice %471 {offsets = [7, 0], sizes = [1, 128], strides = [1, 1]} : vector<8x128xf32> to vector<1x128xf32>
    %500 = vector.extract_strided_slice %471 {offsets = [0, 0], sizes = [7, 128], strides = [1, 1]} : vector<8x128xf32> to vector<7x128xf32>
    %501 = tpu.concatenate %499, %500 in 0 : vector<1x128xf32>, vector<7x128xf32> -> vector<8x128xf32>
    %502 = arith.subf %498, %471 : vector<8x128xf32>
    %503 = arith.subf %471, %501 : vector<8x128xf32>
    %504 = arith.select %11, %502, %503 : vector<8x128xi1>, vector<8x128xf32>
    %cst_103 = arith.constant 1.000000e+01 : f32
    %505 = vector.broadcast %cst_103 : f32 to vector<8x128xf32>
    %506 = arith.mulf %505, %504 : vector<8x128xf32>
    %cst_104 = arith.constant 0.000000e+00 : f32
    %507 = vector.broadcast %cst_104 : f32 to vector<8x128xf32>
    %508 = arith.cmpf oge, %506, %507 : vector<8x128xf32>
    %cst_105 = arith.constant 1.000000e+00 : f32
    %cst_106 = arith.constant -1.000000e+00 : f32
    %509 = vector.broadcast %cst_105 : f32 to vector<8x128xf32>
    %510 = vector.broadcast %cst_106 : f32 to vector<8x128xf32>
    %511 = arith.select %508, %509, %510 : vector<8x128xi1>, vector<8x128xf32>
    %512 = math.absf %506 : vector<8x128xf32>
    %cst_107 = arith.constant 1.000000e+00 : f32
    %513 = vector.broadcast %cst_107 : f32 to vector<8x128xf32>
    %514 = arith.cmpf ogt, %512, %513 : vector<8x128xf32>
    %cst_108 = arith.constant 1.000000e+00 : f32
    %515 = vector.broadcast %cst_108 : f32 to vector<8x128xf32>
    %516 = arith.maximumf %512, %515 : vector<8x128xf32>
    %517 = tpu.reciprocal %516 {approx = true} : vector<8x128xf32> -> vector<8x128xf32>
    %518 = arith.mulf %516, %517 : vector<8x128xf32>
    %cst_109 = arith.constant 2.000000e+00 : f32
    %519 = vector.broadcast %cst_109 : f32 to vector<8x128xf32>
    %520 = arith.subf %519, %518 : vector<8x128xf32>
    %521 = arith.mulf %517, %520 : vector<8x128xf32>
    %522 = arith.mulf %516, %521 : vector<8x128xf32>
    %cst_110 = arith.constant 2.000000e+00 : f32
    %523 = vector.broadcast %cst_110 : f32 to vector<8x128xf32>
    %524 = arith.subf %523, %522 : vector<8x128xf32>
    %525 = arith.mulf %521, %524 : vector<8x128xf32>
    %526 = arith.select %514, %525, %512 : vector<8x128xi1>, vector<8x128xf32>
    %527 = arith.mulf %526, %526 : vector<8x128xf32>
    %cst_111 = arith.constant -0.0039602574 : f32
    %528 = vector.broadcast %cst_111 : f32 to vector<8x128xf32>
    %529 = arith.mulf %528, %527 : vector<8x128xf32>
    %cst_112 = arith.constant 0.0215092544 : f32
    %530 = vector.broadcast %cst_112 : f32 to vector<8x128xf32>
    %531 = arith.addf %529, %530 : vector<8x128xf32>
    %532 = arith.mulf %531, %527 : vector<8x128xf32>
    %cst_113 = arith.constant -0.0553816967 : f32
    %533 = vector.broadcast %cst_113 : f32 to vector<8x128xf32>
    %534 = arith.addf %532, %533 : vector<8x128xf32>
    %535 = arith.mulf %534, %527 : vector<8x128xf32>
    %cst_114 = arith.constant 0.0960165634 : f32
    %536 = vector.broadcast %cst_114 : f32 to vector<8x128xf32>
    %537 = arith.addf %535, %536 : vector<8x128xf32>
    %538 = arith.mulf %537, %527 : vector<8x128xf32>
    %cst_115 = arith.constant -0.138920411 : f32
    %539 = vector.broadcast %cst_115 : f32 to vector<8x128xf32>
    %540 = arith.addf %538, %539 : vector<8x128xf32>
    %541 = arith.mulf %540, %527 : vector<8x128xf32>
    %cst_116 = arith.constant 0.199430808 : f32
    %542 = vector.broadcast %cst_116 : f32 to vector<8x128xf32>
    %543 = arith.addf %541, %542 : vector<8x128xf32>
    %544 = arith.mulf %543, %527 : vector<8x128xf32>
    %cst_117 = arith.constant -0.333295375 : f32
    %545 = vector.broadcast %cst_117 : f32 to vector<8x128xf32>
    %546 = arith.addf %544, %545 : vector<8x128xf32>
    %547 = arith.mulf %546, %527 : vector<8x128xf32>
    %cst_118 = arith.constant 0.999999225 : f32
    %548 = vector.broadcast %cst_118 : f32 to vector<8x128xf32>
    %549 = arith.addf %547, %548 : vector<8x128xf32>
    %550 = arith.mulf %526, %549 : vector<8x128xf32>
    %cst_119 = arith.constant 1.57079637 : f32
    %551 = vector.broadcast %cst_119 : f32 to vector<8x128xf32>
    %552 = arith.subf %551, %550 : vector<8x128xf32>
    %553 = arith.select %514, %552, %550 : vector<8x128xi1>, vector<8x128xf32>
    %554 = arith.mulf %511, %553 : vector<8x128xf32>
    %cst_120 = arith.constant 0.318309873 : f32
    %555 = vector.broadcast %cst_120 : f32 to vector<8x128xf32>
    %556 = arith.mulf %554, %555 : vector<8x128xf32>
    %cst_121 = arith.constant 5.000000e-01 : f32
    %557 = vector.broadcast %cst_121 : f32 to vector<8x128xf32>
    %558 = arith.addf %556, %557 : vector<8x128xf32>
    %559 = arith.mulf %558, %504 : vector<8x128xf32>
    %560 = arith.subf %498, %559 : vector<8x128xf32>
    %561 = arith.addf %501, %559 : vector<8x128xf32>
    %562 = arith.select %18, %561, %471 : vector<8x128xi1>, vector<8x128xf32>
    %563 = arith.select %11, %560, %562 : vector<8x128xi1>, vector<8x128xf32>
    %564 = vector.extract_strided_slice %558 {offsets = [1, 0], sizes = [1, 128], strides = [1, 1]} : vector<8x128xf32> to vector<1x128xf32>
    %565 = arith.subf %477, %482 : vector<8x128xf32>
    %566 = vector.broadcast %564 : vector<1x128xf32> to vector<8x128xf32>
    %567 = arith.mulf %566, %565 : vector<8x128xf32>
    %568 = arith.addf %482, %567 : vector<8x128xf32>
    %569 = arith.subf %477, %567 : vector<8x128xf32>
    %570 = vector.extract_strided_slice %558 {offsets = [3, 0], sizes = [1, 128], strides = [1, 1]} : vector<8x128xf32> to vector<1x128xf32>
    %571 = arith.subf %483, %488 : vector<8x128xf32>
    %572 = vector.broadcast %570 : vector<1x128xf32> to vector<8x128xf32>
    %573 = arith.mulf %572, %571 : vector<8x128xf32>
    %574 = arith.addf %488, %573 : vector<8x128xf32>
    %575 = arith.subf %483, %573 : vector<8x128xf32>
    %576 = vector.extract_strided_slice %558 {offsets = [5, 0], sizes = [1, 128], strides = [1, 1]} : vector<8x128xf32> to vector<1x128xf32>
    %577 = arith.subf %489, %494 : vector<8x128xf32>
    %578 = vector.broadcast %576 : vector<1x128xf32> to vector<8x128xf32>
    %579 = arith.mulf %578, %577 : vector<8x128xf32>
    %580 = arith.addf %494, %579 : vector<8x128xf32>
    %581 = arith.subf %489, %579 : vector<8x128xf32>
    %582 = vector.extract_strided_slice %563 {offsets = [1, 0], sizes = [7, 128], strides = [1, 1]} : vector<8x128xf32> to vector<7x128xf32>
    %583 = vector.extract_strided_slice %563 {offsets = [0, 0], sizes = [1, 128], strides = [1, 1]} : vector<8x128xf32> to vector<1x128xf32>
    %584 = tpu.concatenate %582, %583 in 0 : vector<7x128xf32>, vector<1x128xf32> -> vector<8x128xf32>
    %585 = vector.extract_strided_slice %563 {offsets = [7, 0], sizes = [1, 128], strides = [1, 1]} : vector<8x128xf32> to vector<1x128xf32>
    %586 = vector.extract_strided_slice %563 {offsets = [0, 0], sizes = [7, 128], strides = [1, 1]} : vector<8x128xf32> to vector<7x128xf32>
    %587 = tpu.concatenate %585, %586 in 0 : vector<1x128xf32>, vector<7x128xf32> -> vector<8x128xf32>
    %588 = arith.subf %584, %563 : vector<8x128xf32>
    %589 = arith.subf %563, %587 : vector<8x128xf32>
    %590 = arith.select %8, %588, %589 : vector<8x128xi1>, vector<8x128xf32>
    %cst_122 = arith.constant 1.000000e+01 : f32
    %591 = vector.broadcast %cst_122 : f32 to vector<8x128xf32>
    %592 = arith.mulf %591, %590 : vector<8x128xf32>
    %cst_123 = arith.constant 0.000000e+00 : f32
    %593 = vector.broadcast %cst_123 : f32 to vector<8x128xf32>
    %594 = arith.cmpf oge, %592, %593 : vector<8x128xf32>
    %cst_124 = arith.constant 1.000000e+00 : f32
    %cst_125 = arith.constant -1.000000e+00 : f32
    %595 = vector.broadcast %cst_124 : f32 to vector<8x128xf32>
    %596 = vector.broadcast %cst_125 : f32 to vector<8x128xf32>
    %597 = arith.select %594, %595, %596 : vector<8x128xi1>, vector<8x128xf32>
    %598 = math.absf %592 : vector<8x128xf32>
    %cst_126 = arith.constant 1.000000e+00 : f32
    %599 = vector.broadcast %cst_126 : f32 to vector<8x128xf32>
    %600 = arith.cmpf ogt, %598, %599 : vector<8x128xf32>
    %cst_127 = arith.constant 1.000000e+00 : f32
    %601 = vector.broadcast %cst_127 : f32 to vector<8x128xf32>
    %602 = arith.maximumf %598, %601 : vector<8x128xf32>
    %603 = tpu.reciprocal %602 {approx = true} : vector<8x128xf32> -> vector<8x128xf32>
    %604 = arith.mulf %602, %603 : vector<8x128xf32>
    %cst_128 = arith.constant 2.000000e+00 : f32
    %605 = vector.broadcast %cst_128 : f32 to vector<8x128xf32>
    %606 = arith.subf %605, %604 : vector<8x128xf32>
    %607 = arith.mulf %603, %606 : vector<8x128xf32>
    %608 = arith.mulf %602, %607 : vector<8x128xf32>
    %cst_129 = arith.constant 2.000000e+00 : f32
    %609 = vector.broadcast %cst_129 : f32 to vector<8x128xf32>
    %610 = arith.subf %609, %608 : vector<8x128xf32>
    %611 = arith.mulf %607, %610 : vector<8x128xf32>
    %612 = arith.select %600, %611, %598 : vector<8x128xi1>, vector<8x128xf32>
    %613 = arith.mulf %612, %612 : vector<8x128xf32>
    %cst_130 = arith.constant -0.0039602574 : f32
    %614 = vector.broadcast %cst_130 : f32 to vector<8x128xf32>
    %615 = arith.mulf %614, %613 : vector<8x128xf32>
    %cst_131 = arith.constant 0.0215092544 : f32
    %616 = vector.broadcast %cst_131 : f32 to vector<8x128xf32>
    %617 = arith.addf %615, %616 : vector<8x128xf32>
    %618 = arith.mulf %617, %613 : vector<8x128xf32>
    %cst_132 = arith.constant -0.0553816967 : f32
    %619 = vector.broadcast %cst_132 : f32 to vector<8x128xf32>
    %620 = arith.addf %618, %619 : vector<8x128xf32>
    %621 = arith.mulf %620, %613 : vector<8x128xf32>
    %cst_133 = arith.constant 0.0960165634 : f32
    %622 = vector.broadcast %cst_133 : f32 to vector<8x128xf32>
    %623 = arith.addf %621, %622 : vector<8x128xf32>
    %624 = arith.mulf %623, %613 : vector<8x128xf32>
    %cst_134 = arith.constant -0.138920411 : f32
    %625 = vector.broadcast %cst_134 : f32 to vector<8x128xf32>
    %626 = arith.addf %624, %625 : vector<8x128xf32>
    %627 = arith.mulf %626, %613 : vector<8x128xf32>
    %cst_135 = arith.constant 0.199430808 : f32
    %628 = vector.broadcast %cst_135 : f32 to vector<8x128xf32>
    %629 = arith.addf %627, %628 : vector<8x128xf32>
    %630 = arith.mulf %629, %613 : vector<8x128xf32>
    %cst_136 = arith.constant -0.333295375 : f32
    %631 = vector.broadcast %cst_136 : f32 to vector<8x128xf32>
    %632 = arith.addf %630, %631 : vector<8x128xf32>
    %633 = arith.mulf %632, %613 : vector<8x128xf32>
    %cst_137 = arith.constant 0.999999225 : f32
    %634 = vector.broadcast %cst_137 : f32 to vector<8x128xf32>
    %635 = arith.addf %633, %634 : vector<8x128xf32>
    %636 = arith.mulf %612, %635 : vector<8x128xf32>
    %cst_138 = arith.constant 1.57079637 : f32
    %637 = vector.broadcast %cst_138 : f32 to vector<8x128xf32>
    %638 = arith.subf %637, %636 : vector<8x128xf32>
    %639 = arith.select %600, %638, %636 : vector<8x128xi1>, vector<8x128xf32>
    %640 = arith.mulf %597, %639 : vector<8x128xf32>
    %cst_139 = arith.constant 0.318309873 : f32
    %641 = vector.broadcast %cst_139 : f32 to vector<8x128xf32>
    %642 = arith.mulf %640, %641 : vector<8x128xf32>
    %cst_140 = arith.constant 5.000000e-01 : f32
    %643 = vector.broadcast %cst_140 : f32 to vector<8x128xf32>
    %644 = arith.addf %642, %643 : vector<8x128xf32>
    %645 = arith.mulf %644, %590 : vector<8x128xf32>
    %646 = arith.subf %584, %645 : vector<8x128xf32>
    %647 = arith.addf %587, %645 : vector<8x128xf32>
    %648 = arith.select %8, %646, %647 : vector<8x128xi1>, vector<8x128xf32>
    %649 = vector.extract_strided_slice %644 {offsets = [0, 0], sizes = [1, 128], strides = [1, 1]} : vector<8x128xf32> to vector<1x128xf32>
    %650 = arith.subf %476, %568 : vector<8x128xf32>
    %651 = vector.broadcast %649 : vector<1x128xf32> to vector<8x128xf32>
    %652 = arith.mulf %651, %650 : vector<8x128xf32>
    %653 = arith.addf %568, %652 : vector<8x128xf32>
    %654 = arith.subf %476, %652 : vector<8x128xf32>
    %655 = vector.extract_strided_slice %644 {offsets = [2, 0], sizes = [1, 128], strides = [1, 1]} : vector<8x128xf32> to vector<1x128xf32>
    %656 = arith.subf %569, %574 : vector<8x128xf32>
    %657 = vector.broadcast %655 : vector<1x128xf32> to vector<8x128xf32>
    %658 = arith.mulf %657, %656 : vector<8x128xf32>
    %659 = arith.addf %574, %658 : vector<8x128xf32>
    %660 = arith.subf %569, %658 : vector<8x128xf32>
    %661 = vector.extract_strided_slice %644 {offsets = [4, 0], sizes = [1, 128], strides = [1, 1]} : vector<8x128xf32> to vector<1x128xf32>
    %662 = arith.subf %575, %580 : vector<8x128xf32>
    %663 = vector.broadcast %661 : vector<1x128xf32> to vector<8x128xf32>
    %664 = arith.mulf %663, %662 : vector<8x128xf32>
    %665 = arith.addf %580, %664 : vector<8x128xf32>
    %666 = arith.subf %575, %664 : vector<8x128xf32>
    %667 = vector.extract_strided_slice %644 {offsets = [6, 0], sizes = [1, 128], strides = [1, 1]} : vector<8x128xf32> to vector<1x128xf32>
    %668 = arith.subf %581, %495 : vector<8x128xf32>
    %669 = vector.broadcast %667 : vector<1x128xf32> to vector<8x128xf32>
    %670 = arith.mulf %669, %668 : vector<8x128xf32>
    %671 = arith.addf %495, %670 : vector<8x128xf32>
    %672 = arith.subf %581, %670 : vector<8x128xf32>
    %673 = vector.extract_strided_slice %648 {offsets = [1, 0], sizes = [7, 128], strides = [1, 1]} : vector<8x128xf32> to vector<7x128xf32>
    %674 = vector.extract_strided_slice %648 {offsets = [0, 0], sizes = [1, 128], strides = [1, 1]} : vector<8x128xf32> to vector<1x128xf32>
    %675 = tpu.concatenate %673, %674 in 0 : vector<7x128xf32>, vector<1x128xf32> -> vector<8x128xf32>
    %676 = vector.extract_strided_slice %648 {offsets = [7, 0], sizes = [1, 128], strides = [1, 1]} : vector<8x128xf32> to vector<1x128xf32>
    %677 = vector.extract_strided_slice %648 {offsets = [0, 0], sizes = [7, 128], strides = [1, 1]} : vector<8x128xf32> to vector<7x128xf32>
    %678 = tpu.concatenate %676, %677 in 0 : vector<1x128xf32>, vector<7x128xf32> -> vector<8x128xf32>
    %679 = arith.subf %675, %648 : vector<8x128xf32>
    %680 = arith.subf %648, %678 : vector<8x128xf32>
    %681 = arith.select %11, %679, %680 : vector<8x128xi1>, vector<8x128xf32>
    %cst_141 = arith.constant 1.000000e+01 : f32
    %682 = vector.broadcast %cst_141 : f32 to vector<8x128xf32>
    %683 = arith.mulf %682, %681 : vector<8x128xf32>
    %cst_142 = arith.constant 0.000000e+00 : f32
    %684 = vector.broadcast %cst_142 : f32 to vector<8x128xf32>
    %685 = arith.cmpf oge, %683, %684 : vector<8x128xf32>
    %cst_143 = arith.constant 1.000000e+00 : f32
    %cst_144 = arith.constant -1.000000e+00 : f32
    %686 = vector.broadcast %cst_143 : f32 to vector<8x128xf32>
    %687 = vector.broadcast %cst_144 : f32 to vector<8x128xf32>
    %688 = arith.select %685, %686, %687 : vector<8x128xi1>, vector<8x128xf32>
    %689 = math.absf %683 : vector<8x128xf32>
    %cst_145 = arith.constant 1.000000e+00 : f32
    %690 = vector.broadcast %cst_145 : f32 to vector<8x128xf32>
    %691 = arith.cmpf ogt, %689, %690 : vector<8x128xf32>
    %cst_146 = arith.constant 1.000000e+00 : f32
    %692 = vector.broadcast %cst_146 : f32 to vector<8x128xf32>
    %693 = arith.maximumf %689, %692 : vector<8x128xf32>
    %694 = tpu.reciprocal %693 {approx = true} : vector<8x128xf32> -> vector<8x128xf32>
    %695 = arith.mulf %693, %694 : vector<8x128xf32>
    %cst_147 = arith.constant 2.000000e+00 : f32
    %696 = vector.broadcast %cst_147 : f32 to vector<8x128xf32>
    %697 = arith.subf %696, %695 : vector<8x128xf32>
    %698 = arith.mulf %694, %697 : vector<8x128xf32>
    %699 = arith.mulf %693, %698 : vector<8x128xf32>
    %cst_148 = arith.constant 2.000000e+00 : f32
    %700 = vector.broadcast %cst_148 : f32 to vector<8x128xf32>
    %701 = arith.subf %700, %699 : vector<8x128xf32>
    %702 = arith.mulf %698, %701 : vector<8x128xf32>
    %703 = arith.select %691, %702, %689 : vector<8x128xi1>, vector<8x128xf32>
    %704 = arith.mulf %703, %703 : vector<8x128xf32>
    %cst_149 = arith.constant -0.0039602574 : f32
    %705 = vector.broadcast %cst_149 : f32 to vector<8x128xf32>
    %706 = arith.mulf %705, %704 : vector<8x128xf32>
    %cst_150 = arith.constant 0.0215092544 : f32
    %707 = vector.broadcast %cst_150 : f32 to vector<8x128xf32>
    %708 = arith.addf %706, %707 : vector<8x128xf32>
    %709 = arith.mulf %708, %704 : vector<8x128xf32>
    %cst_151 = arith.constant -0.0553816967 : f32
    %710 = vector.broadcast %cst_151 : f32 to vector<8x128xf32>
    %711 = arith.addf %709, %710 : vector<8x128xf32>
    %712 = arith.mulf %711, %704 : vector<8x128xf32>
    %cst_152 = arith.constant 0.0960165634 : f32
    %713 = vector.broadcast %cst_152 : f32 to vector<8x128xf32>
    %714 = arith.addf %712, %713 : vector<8x128xf32>
    %715 = arith.mulf %714, %704 : vector<8x128xf32>
    %cst_153 = arith.constant -0.138920411 : f32
    %716 = vector.broadcast %cst_153 : f32 to vector<8x128xf32>
    %717 = arith.addf %715, %716 : vector<8x128xf32>
    %718 = arith.mulf %717, %704 : vector<8x128xf32>
    %cst_154 = arith.constant 0.199430808 : f32
    %719 = vector.broadcast %cst_154 : f32 to vector<8x128xf32>
    %720 = arith.addf %718, %719 : vector<8x128xf32>
    %721 = arith.mulf %720, %704 : vector<8x128xf32>
    %cst_155 = arith.constant -0.333295375 : f32
    %722 = vector.broadcast %cst_155 : f32 to vector<8x128xf32>
    %723 = arith.addf %721, %722 : vector<8x128xf32>
    %724 = arith.mulf %723, %704 : vector<8x128xf32>
    %cst_156 = arith.constant 0.999999225 : f32
    %725 = vector.broadcast %cst_156 : f32 to vector<8x128xf32>
    %726 = arith.addf %724, %725 : vector<8x128xf32>
    %727 = arith.mulf %703, %726 : vector<8x128xf32>
    %cst_157 = arith.constant 1.57079637 : f32
    %728 = vector.broadcast %cst_157 : f32 to vector<8x128xf32>
    %729 = arith.subf %728, %727 : vector<8x128xf32>
    %730 = arith.select %691, %729, %727 : vector<8x128xi1>, vector<8x128xf32>
    %731 = arith.mulf %688, %730 : vector<8x128xf32>
    %cst_158 = arith.constant 0.318309873 : f32
    %732 = vector.broadcast %cst_158 : f32 to vector<8x128xf32>
    %733 = arith.mulf %731, %732 : vector<8x128xf32>
    %cst_159 = arith.constant 5.000000e-01 : f32
    %734 = vector.broadcast %cst_159 : f32 to vector<8x128xf32>
    %735 = arith.addf %733, %734 : vector<8x128xf32>
    %736 = vector.extract_strided_slice %735 {offsets = [1, 0], sizes = [1, 128], strides = [1, 1]} : vector<8x128xf32> to vector<1x128xf32>
    %737 = arith.subf %654, %659 : vector<8x128xf32>
    %738 = vector.broadcast %736 : vector<1x128xf32> to vector<8x128xf32>
    %739 = arith.mulf %738, %737 : vector<8x128xf32>
    %740 = arith.addf %659, %739 : vector<8x128xf32>
    %741 = arith.subf %654, %739 : vector<8x128xf32>
    %742 = vector.extract_strided_slice %735 {offsets = [3, 0], sizes = [1, 128], strides = [1, 1]} : vector<8x128xf32> to vector<1x128xf32>
    %743 = arith.subf %660, %665 : vector<8x128xf32>
    %744 = vector.broadcast %742 : vector<1x128xf32> to vector<8x128xf32>
    %745 = arith.mulf %744, %743 : vector<8x128xf32>
    %746 = arith.addf %665, %745 : vector<8x128xf32>
    %747 = arith.subf %660, %745 : vector<8x128xf32>
    %748 = vector.extract_strided_slice %735 {offsets = [5, 0], sizes = [1, 128], strides = [1, 1]} : vector<8x128xf32> to vector<1x128xf32>
    %749 = arith.subf %666, %671 : vector<8x128xf32>
    %750 = vector.broadcast %748 : vector<1x128xf32> to vector<8x128xf32>
    %751 = arith.mulf %750, %749 : vector<8x128xf32>
    %752 = arith.addf %671, %751 : vector<8x128xf32>
    %753 = arith.subf %666, %751 : vector<8x128xf32>
    %c0_160 = arith.constant 0 : index
    %c0_161 = arith.constant 0 : index
    %754 = vector.load %arg2[%c0_160, %c0_161] : memref<8x128xf32, #tpu.memory_space<vmem>>, vector<8x128xf32>
    %cst_162 = arith.constant 0.000000e+00 : f32
    %755 = vector.broadcast %cst_162 : f32 to vector<8x128xf32>
    %756 = arith.subf %755, %754 : vector<8x128xf32>
    %c0_i32_163 = arith.constant 0 : i32
    %757 = vector.broadcast %c0_i32_163 : i32 to vector<8x128xi32>
    %758 = vector.extract_strided_slice %756 {offsets = [7, 0], sizes = [1, 128], strides = [1, 1]} : vector<8x128xf32> to vector<1x128xf32>
    %759 = vector.extract_strided_slice %756 {offsets = [0, 0], sizes = [7, 128], strides = [1, 1]} : vector<8x128xf32> to vector<7x128xf32>
    %760 = tpu.concatenate %758, %759 in 0 : vector<1x128xf32>, vector<7x128xf32> -> vector<8x128xf32>
    %c1_i32_164 = arith.constant 1 : i32
    %761 = vector.broadcast %c1_i32_164 : i32 to vector<8x128xi32>
    %762 = arith.cmpi sge, %3, %761 : vector<8x128xi32>
    %763 = arith.cmpf olt, %760, %756 : vector<8x128xf32>
    %764 = arith.cmpf oeq, %760, %756 : vector<8x128xf32>
    %765 = arith.andi %764, %762 : vector<8x128xi1>
    %766 = arith.ori %763, %765 : vector<8x128xi1>
    %767 = arith.extui %766 : vector<8x128xi1> to vector<8x128xi32>
    %768 = arith.addi %757, %767 : vector<8x128xi32>
    %769 = vector.extract_strided_slice %756 {offsets = [6, 0], sizes = [2, 128], strides = [1, 1]} : vector<8x128xf32> to vector<2x128xf32>
    %770 = vector.extract_strided_slice %756 {offsets = [0, 0], sizes = [6, 128], strides = [1, 1]} : vector<8x128xf32> to vector<6x128xf32>
    %771 = tpu.concatenate %769, %770 in 0 : vector<2x128xf32>, vector<6x128xf32> -> vector<8x128xf32>
    %c2_i32_165 = arith.constant 2 : i32
    %772 = vector.broadcast %c2_i32_165 : i32 to vector<8x128xi32>
    %773 = arith.cmpi sge, %3, %772 : vector<8x128xi32>
    %774 = arith.cmpf olt, %771, %756 : vector<8x128xf32>
    %775 = arith.cmpf oeq, %771, %756 : vector<8x128xf32>
    %776 = arith.andi %775, %773 : vector<8x128xi1>
    %777 = arith.ori %774, %776 : vector<8x128xi1>
    %778 = arith.extui %777 : vector<8x128xi1> to vector<8x128xi32>
    %779 = arith.addi %768, %778 : vector<8x128xi32>
    %780 = vector.extract_strided_slice %756 {offsets = [5, 0], sizes = [3, 128], strides = [1, 1]} : vector<8x128xf32> to vector<3x128xf32>
    %781 = vector.extract_strided_slice %756 {offsets = [0, 0], sizes = [5, 128], strides = [1, 1]} : vector<8x128xf32> to vector<5x128xf32>
    %782 = tpu.concatenate %780, %781 in 0 : vector<3x128xf32>, vector<5x128xf32> -> vector<8x128xf32>
    %c3_i32_166 = arith.constant 3 : i32
    %783 = vector.broadcast %c3_i32_166 : i32 to vector<8x128xi32>
    %784 = arith.cmpi sge, %3, %783 : vector<8x128xi32>
    %785 = arith.cmpf olt, %782, %756 : vector<8x128xf32>
    %786 = arith.cmpf oeq, %782, %756 : vector<8x128xf32>
    %787 = arith.andi %786, %784 : vector<8x128xi1>
    %788 = arith.ori %785, %787 : vector<8x128xi1>
    %789 = arith.extui %788 : vector<8x128xi1> to vector<8x128xi32>
    %790 = arith.addi %779, %789 : vector<8x128xi32>
    %791 = vector.extract_strided_slice %756 {offsets = [4, 0], sizes = [4, 128], strides = [1, 1]} : vector<8x128xf32> to vector<4x128xf32>
    %792 = vector.extract_strided_slice %756 {offsets = [0, 0], sizes = [4, 128], strides = [1, 1]} : vector<8x128xf32> to vector<4x128xf32>
    %793 = tpu.concatenate %791, %792 in 0 : vector<4x128xf32>, vector<4x128xf32> -> vector<8x128xf32>
    %c4_i32_167 = arith.constant 4 : i32
    %794 = vector.broadcast %c4_i32_167 : i32 to vector<8x128xi32>
    %795 = arith.cmpi sge, %3, %794 : vector<8x128xi32>
    %796 = arith.cmpf olt, %793, %756 : vector<8x128xf32>
    %797 = arith.cmpf oeq, %793, %756 : vector<8x128xf32>
    %798 = arith.andi %797, %795 : vector<8x128xi1>
    %799 = arith.ori %796, %798 : vector<8x128xi1>
    %800 = arith.extui %799 : vector<8x128xi1> to vector<8x128xi32>
    %801 = arith.addi %790, %800 : vector<8x128xi32>
    %802 = vector.extract_strided_slice %756 {offsets = [3, 0], sizes = [5, 128], strides = [1, 1]} : vector<8x128xf32> to vector<5x128xf32>
    %803 = vector.extract_strided_slice %756 {offsets = [0, 0], sizes = [3, 128], strides = [1, 1]} : vector<8x128xf32> to vector<3x128xf32>
    %804 = tpu.concatenate %802, %803 in 0 : vector<5x128xf32>, vector<3x128xf32> -> vector<8x128xf32>
    %c5_i32_168 = arith.constant 5 : i32
    %805 = vector.broadcast %c5_i32_168 : i32 to vector<8x128xi32>
    %806 = arith.cmpi sge, %3, %805 : vector<8x128xi32>
    %807 = arith.cmpf olt, %804, %756 : vector<8x128xf32>
    %808 = arith.cmpf oeq, %804, %756 : vector<8x128xf32>
    %809 = arith.andi %808, %806 : vector<8x128xi1>
    %810 = arith.ori %807, %809 : vector<8x128xi1>
    %811 = arith.extui %810 : vector<8x128xi1> to vector<8x128xi32>
    %812 = arith.addi %801, %811 : vector<8x128xi32>
    %813 = vector.extract_strided_slice %756 {offsets = [2, 0], sizes = [6, 128], strides = [1, 1]} : vector<8x128xf32> to vector<6x128xf32>
    %814 = vector.extract_strided_slice %756 {offsets = [0, 0], sizes = [2, 128], strides = [1, 1]} : vector<8x128xf32> to vector<2x128xf32>
    %815 = tpu.concatenate %813, %814 in 0 : vector<6x128xf32>, vector<2x128xf32> -> vector<8x128xf32>
    %c6_i32_169 = arith.constant 6 : i32
    %816 = vector.broadcast %c6_i32_169 : i32 to vector<8x128xi32>
    %817 = arith.cmpi sge, %3, %816 : vector<8x128xi32>
    %818 = arith.cmpf olt, %815, %756 : vector<8x128xf32>
    %819 = arith.cmpf oeq, %815, %756 : vector<8x128xf32>
    %820 = arith.andi %819, %817 : vector<8x128xi1>
    %821 = arith.ori %818, %820 : vector<8x128xi1>
    %822 = arith.extui %821 : vector<8x128xi1> to vector<8x128xi32>
    %823 = arith.addi %812, %822 : vector<8x128xi32>
    %824 = vector.extract_strided_slice %756 {offsets = [1, 0], sizes = [7, 128], strides = [1, 1]} : vector<8x128xf32> to vector<7x128xf32>
    %825 = vector.extract_strided_slice %756 {offsets = [0, 0], sizes = [1, 128], strides = [1, 1]} : vector<8x128xf32> to vector<1x128xf32>
    %826 = tpu.concatenate %824, %825 in 0 : vector<7x128xf32>, vector<1x128xf32> -> vector<8x128xf32>
    %c7_i32_170 = arith.constant 7 : i32
    %827 = vector.broadcast %c7_i32_170 : i32 to vector<8x128xi32>
    %828 = arith.cmpi sge, %3, %827 : vector<8x128xi32>
    %829 = arith.cmpf olt, %826, %756 : vector<8x128xf32>
    %830 = arith.cmpf oeq, %826, %756 : vector<8x128xf32>
    %831 = arith.andi %830, %828 : vector<8x128xi1>
    %832 = arith.ori %829, %831 : vector<8x128xi1>
    %833 = arith.extui %832 : vector<8x128xi1> to vector<8x128xi32>
    %834 = arith.addi %823, %833 : vector<8x128xi32>
    %cst_171 = arith.constant 0.000000e+00 : f32
    %835 = vector.broadcast %cst_171 : f32 to vector<8x128xf32>
    %cst_172 = arith.constant 0.000000e+00 : f32
    %cst_173 = arith.constant 1.000000e+00 : f32
    %836 = vector.broadcast %cst_172 : f32 to vector<8x128xf32>
    %837 = arith.maximumf %836, %653 : vector<8x128xf32>
    %838 = vector.broadcast %cst_173 : f32 to vector<8x128xf32>
    %839 = arith.minimumf %838, %837 : vector<8x128xf32>
    %c0_i32_174 = arith.constant 0 : i32
    %840 = vector.broadcast %c0_i32_174 : i32 to vector<8x128xi32>
    %841 = arith.cmpi eq, %834, %840 : vector<8x128xi32>
    %cst_175 = arith.constant 1.000000e+00 : f32
    %842 = vector.broadcast %cst_175 : f32 to vector<8x128xf32>
    %843 = arith.subf %842, %839 : vector<8x128xf32>
    %844 = arith.select %841, %839, %843 : vector<8x128xi1>, vector<8x128xf32>
    %845 = math.log %844 : vector<8x128xf32>
    %cst_176 = arith.constant -1.000000e+02 : f32
    %846 = vector.broadcast %cst_176 : f32 to vector<8x128xf32>
    %847 = arith.maximumf %845, %846 : vector<8x128xf32>
    %848 = arith.subf %835, %847 : vector<8x128xf32>
    %cst_177 = arith.constant 0.000000e+00 : f32
    %cst_178 = arith.constant 1.000000e+00 : f32
    %849 = vector.broadcast %cst_177 : f32 to vector<8x128xf32>
    %850 = arith.maximumf %849, %740 : vector<8x128xf32>
    %851 = vector.broadcast %cst_178 : f32 to vector<8x128xf32>
    %852 = arith.minimumf %851, %850 : vector<8x128xf32>
    %c1_i32_179 = arith.constant 1 : i32
    %853 = vector.broadcast %c1_i32_179 : i32 to vector<8x128xi32>
    %854 = arith.cmpi eq, %834, %853 : vector<8x128xi32>
    %cst_180 = arith.constant 1.000000e+00 : f32
    %855 = vector.broadcast %cst_180 : f32 to vector<8x128xf32>
    %856 = arith.subf %855, %852 : vector<8x128xf32>
    %857 = arith.select %854, %852, %856 : vector<8x128xi1>, vector<8x128xf32>
    %858 = math.log %857 : vector<8x128xf32>
    %cst_181 = arith.constant -1.000000e+02 : f32
    %859 = vector.broadcast %cst_181 : f32 to vector<8x128xf32>
    %860 = arith.maximumf %858, %859 : vector<8x128xf32>
    %861 = arith.subf %848, %860 : vector<8x128xf32>
    %cst_182 = arith.constant 0.000000e+00 : f32
    %cst_183 = arith.constant 1.000000e+00 : f32
    %862 = vector.broadcast %cst_182 : f32 to vector<8x128xf32>
    %863 = arith.maximumf %862, %741 : vector<8x128xf32>
    %864 = vector.broadcast %cst_183 : f32 to vector<8x128xf32>
    %865 = arith.minimumf %864, %863 : vector<8x128xf32>
    %c2_i32_184 = arith.constant 2 : i32
    %866 = vector.broadcast %c2_i32_184 : i32 to vector<8x128xi32>
    %867 = arith.cmpi eq, %834, %866 : vector<8x128xi32>
    %cst_185 = arith.constant 1.000000e+00 : f32
    %868 = vector.broadcast %cst_185 : f32 to vector<8x128xf32>
    %869 = arith.subf %868, %865 : vector<8x128xf32>
    %870 = arith.select %867, %865, %869 : vector<8x128xi1>, vector<8x128xf32>
    %871 = math.log %870 : vector<8x128xf32>
    %cst_186 = arith.constant -1.000000e+02 : f32
    %872 = vector.broadcast %cst_186 : f32 to vector<8x128xf32>
    %873 = arith.maximumf %871, %872 : vector<8x128xf32>
    %874 = arith.subf %861, %873 : vector<8x128xf32>
    %cst_187 = arith.constant 0.000000e+00 : f32
    %cst_188 = arith.constant 1.000000e+00 : f32
    %875 = vector.broadcast %cst_187 : f32 to vector<8x128xf32>
    %876 = arith.maximumf %875, %746 : vector<8x128xf32>
    %877 = vector.broadcast %cst_188 : f32 to vector<8x128xf32>
    %878 = arith.minimumf %877, %876 : vector<8x128xf32>
    %c3_i32_189 = arith.constant 3 : i32
    %879 = vector.broadcast %c3_i32_189 : i32 to vector<8x128xi32>
    %880 = arith.cmpi eq, %834, %879 : vector<8x128xi32>
    %cst_190 = arith.constant 1.000000e+00 : f32
    %881 = vector.broadcast %cst_190 : f32 to vector<8x128xf32>
    %882 = arith.subf %881, %878 : vector<8x128xf32>
    %883 = arith.select %880, %878, %882 : vector<8x128xi1>, vector<8x128xf32>
    %884 = math.log %883 : vector<8x128xf32>
    %cst_191 = arith.constant -1.000000e+02 : f32
    %885 = vector.broadcast %cst_191 : f32 to vector<8x128xf32>
    %886 = arith.maximumf %884, %885 : vector<8x128xf32>
    %887 = arith.subf %874, %886 : vector<8x128xf32>
    %cst_192 = arith.constant 0.000000e+00 : f32
    %cst_193 = arith.constant 1.000000e+00 : f32
    %888 = vector.broadcast %cst_192 : f32 to vector<8x128xf32>
    %889 = arith.maximumf %888, %747 : vector<8x128xf32>
    %890 = vector.broadcast %cst_193 : f32 to vector<8x128xf32>
    %891 = arith.minimumf %890, %889 : vector<8x128xf32>
    %c4_i32_194 = arith.constant 4 : i32
    %892 = vector.broadcast %c4_i32_194 : i32 to vector<8x128xi32>
    %893 = arith.cmpi eq, %834, %892 : vector<8x128xi32>
    %cst_195 = arith.constant 1.000000e+00 : f32
    %894 = vector.broadcast %cst_195 : f32 to vector<8x128xf32>
    %895 = arith.subf %894, %891 : vector<8x128xf32>
    %896 = arith.select %893, %891, %895 : vector<8x128xi1>, vector<8x128xf32>
    %897 = math.log %896 : vector<8x128xf32>
    %cst_196 = arith.constant -1.000000e+02 : f32
    %898 = vector.broadcast %cst_196 : f32 to vector<8x128xf32>
    %899 = arith.maximumf %897, %898 : vector<8x128xf32>
    %900 = arith.subf %887, %899 : vector<8x128xf32>
    %cst_197 = arith.constant 0.000000e+00 : f32
    %cst_198 = arith.constant 1.000000e+00 : f32
    %901 = vector.broadcast %cst_197 : f32 to vector<8x128xf32>
    %902 = arith.maximumf %901, %752 : vector<8x128xf32>
    %903 = vector.broadcast %cst_198 : f32 to vector<8x128xf32>
    %904 = arith.minimumf %903, %902 : vector<8x128xf32>
    %c5_i32_199 = arith.constant 5 : i32
    %905 = vector.broadcast %c5_i32_199 : i32 to vector<8x128xi32>
    %906 = arith.cmpi eq, %834, %905 : vector<8x128xi32>
    %cst_200 = arith.constant 1.000000e+00 : f32
    %907 = vector.broadcast %cst_200 : f32 to vector<8x128xf32>
    %908 = arith.subf %907, %904 : vector<8x128xf32>
    %909 = arith.select %906, %904, %908 : vector<8x128xi1>, vector<8x128xf32>
    %910 = math.log %909 : vector<8x128xf32>
    %cst_201 = arith.constant -1.000000e+02 : f32
    %911 = vector.broadcast %cst_201 : f32 to vector<8x128xf32>
    %912 = arith.maximumf %910, %911 : vector<8x128xf32>
    %913 = arith.subf %900, %912 : vector<8x128xf32>
    %cst_202 = arith.constant 0.000000e+00 : f32
    %cst_203 = arith.constant 1.000000e+00 : f32
    %914 = vector.broadcast %cst_202 : f32 to vector<8x128xf32>
    %915 = arith.maximumf %914, %753 : vector<8x128xf32>
    %916 = vector.broadcast %cst_203 : f32 to vector<8x128xf32>
    %917 = arith.minimumf %916, %915 : vector<8x128xf32>
    %c6_i32_204 = arith.constant 6 : i32
    %918 = vector.broadcast %c6_i32_204 : i32 to vector<8x128xi32>
    %919 = arith.cmpi eq, %834, %918 : vector<8x128xi32>
    %cst_205 = arith.constant 1.000000e+00 : f32
    %920 = vector.broadcast %cst_205 : f32 to vector<8x128xf32>
    %921 = arith.subf %920, %917 : vector<8x128xf32>
    %922 = arith.select %919, %917, %921 : vector<8x128xi1>, vector<8x128xf32>
    %923 = math.log %922 : vector<8x128xf32>
    %cst_206 = arith.constant -1.000000e+02 : f32
    %924 = vector.broadcast %cst_206 : f32 to vector<8x128xf32>
    %925 = arith.maximumf %923, %924 : vector<8x128xf32>
    %926 = arith.subf %913, %925 : vector<8x128xf32>
    %cst_207 = arith.constant 0.000000e+00 : f32
    %cst_208 = arith.constant 1.000000e+00 : f32
    %927 = vector.broadcast %cst_207 : f32 to vector<8x128xf32>
    %928 = arith.maximumf %927, %672 : vector<8x128xf32>
    %929 = vector.broadcast %cst_208 : f32 to vector<8x128xf32>
    %930 = arith.minimumf %929, %928 : vector<8x128xf32>
    %c7_i32_209 = arith.constant 7 : i32
    %931 = vector.broadcast %c7_i32_209 : i32 to vector<8x128xi32>
    %932 = arith.cmpi eq, %834, %931 : vector<8x128xi32>
    %cst_210 = arith.constant 1.000000e+00 : f32
    %933 = vector.broadcast %cst_210 : f32 to vector<8x128xf32>
    %934 = arith.subf %933, %930 : vector<8x128xf32>
    %935 = arith.select %932, %930, %934 : vector<8x128xi1>, vector<8x128xf32>
    %936 = math.log %935 : vector<8x128xf32>
    %cst_211 = arith.constant -1.000000e+02 : f32
    %937 = vector.broadcast %cst_211 : f32 to vector<8x128xf32>
    %938 = arith.maximumf %936, %937 : vector<8x128xf32>
    %939 = arith.subf %926, %938 : vector<8x128xf32>
    %cst_212 = arith.constant dense<0.000000e+00> : vector<128xf32>
    %940 = vector.multi_reduction <add>, %939, %cst_212 [0] : vector<8x128xf32> to vector<128xf32>
    %941 = vector.shape_cast %940 : vector<128xf32> to vector<1x128xf32>
    %c0_213 = arith.constant 0 : index
    %c0_214 = arith.constant 0 : index
    %942 = vector.load %arg3[%c0_213, %c0_214] : memref<1x128xf32, #tpu.memory_space<vmem>>, vector<1x128xf32>
    tpu.vector_store %arg3[%c0_213, %c0_214], %941 {strides = array<i32>} : memref<1x128xf32, #tpu.memory_space<vmem>>, vector<1x128xf32>,
    return
  }
  func.func @transform_0(%arg0: i32) -> (i32, i32) {
    %c0_i32 = arith.constant 0 : i32
    %c0_i32_0 = arith.constant 0 : i32
    return %c0_i32, %arg0 : i32, i32
  }
  func.func @transform_1(%arg0: i32) -> (i32, i32) {
    %c0_i32 = arith.constant 0 : i32
    %c0_i32_0 = arith.constant 0 : i32
    return %c0_i32, %arg0 : i32, i32
  }
  func.func @transform_2(%arg0: i32) -> (i32, i32) {
    %c0_i32 = arith.constant 0 : i32
    %c0_i32_0 = arith.constant 0 : i32
    return %c0_i32, %arg0 : i32, i32
  }
}

</mosaic_0001>

<llo_original>
// kernel: loss_fn.1
$region0: #{loss_fn.1}
  #allocation0 [shape = 'u32[]', space=smem, size = 0x4, offset = 0x4, fixed_abs, tag = 'smem constant byte address 0x4 - core index']
  #allocation1 [shape = 'u32[144,128]{1,0:T(1,128)}', space=vmem, size = 0x12000, scoped, tag = 'internal scratch']
  %s0 = inlined_call_operand.vmem [shape: f32[8,128], index: 0, kind: input, shape index: {}]
  %s1 = inlined_call_operand.vmem [shape: f32[8,128], index: 1, kind: input, shape index: {}]
  %s2 = inlined_call_operand.vmem [shape: f32[1,128], index: 2, kind: output, shape index: {}]
  %s3 = sld [smem:[#allocation0]]
  $region18: #{loss_fn.1} parent=0
    _
  %s5 = ssub.s32 1, %s3
  %s6 = scalar_select 0, %s5, %s3
  // Predicated region
  $region2: #{loss_fn.1} parent=0 // pred_check
    _
  $region3: #{loss_fn.1} parent=0 // pred_check_branch
    %8 = sbr.rel (0) target = $region5
  $region4: #{loss_fn.1} parent=0 // pred_region
    _
  $region5: #{loss_fn.1} parent=0 // pred_fallthru
    _
  // Predicated region
  $region6: #{loss_fn.1} parent=0 // pred_check
    _
  $region7: #{loss_fn.1} parent=0 // pred_check_branch
    %10 = sbr.rel (0) target = $region9
  $region8: #{loss_fn.1} parent=0 // pred_region
    _
  $region9: #{loss_fn.1} parent=0 // pred_fallthru
    _
  %v11 = vld [vmem:[%s0] sm:$0xff]
  %v12 = vsub.f32 0.0, %v11
  %v13 = vlaneseq
  %v14 = vshrl.u32 %v13, 7
  %v15 = vand.u32 %v14, 1
  %vm16 = vcmp.eq.s32.totalorder %v15, 1
  %vm17 = vmxor %vm16, 1
  %vm18 = vcmp.lt.s32.totalorder %v14, 7
  %vm19 = vmand %vm16, %vm18
  %vm20 = vcmp.gt.s32.totalorder %v14, 0
  %vm21 = vmand %vm17, %vm20
  %vm22 = vmand %vm21, %vm18
  %vm23 = vcmp.eq.s32.totalorder %v14, 0
  %v24 = vsel %vm23, 1, 0
  %v25 = vcvt.s32.f32 %v24
  %vm26 = vcmp.eq.s32.totalorder %v14, 1
  %v27 = vsel %vm26, 1, 0
  %v28 = vcvt.s32.f32 %v27
  %vm29 = vcmp.eq.s32.totalorder %v14, 2
  %v30 = vsel %vm29, 1, 0
  %v31 = vcvt.s32.f32 %v30
  %vm32 = vcmp.eq.s32.totalorder %v14, 3
  %v33 = vsel %vm32, 1, 0
  %v34 = vcvt.s32.f32 %v33
  %vm35 = vcmp.eq.s32.totalorder %v14, 4
  %v36 = vsel %vm35, 1, 0
  %v37 = vcvt.s32.f32 %v36
  %vm38 = vcmp.eq.s32.totalorder %v14, 5
  %v39 = vsel %vm38, 1, 0
  %v40 = vcvt.s32.f32 %v39
  %vm41 = vcmp.eq.s32.totalorder %v14, 6
  %v42 = vsel %vm41, 1, 0
  %v43 = vcvt.s32.f32 %v42
  %vm44 = vcmp.eq.s32.totalorder %v14, 7
  %v45 = vsel %vm44, 1, 0
  %v46 = vcvt.s32.f32 %v45
  %v48 = vrot.slane %v12, 1
  %vm50 = vcmask 1046528
  %v51 = vsel %vm50, %v48, %v48
  %v52 = vrot.slane %v12, 7
  %vm54 = vcmask 1040384
  %v55 = vsel %vm54, %v52, %v52
  %v56 = vsub.f32 %v51, %v12
  %v57 = vsub.f32 %v12, %v55
  %v58 = vsel %vm17, %v56, %v57
  %v59 = vmul.f32 %v58, 10.0
  %vm60 = vcmp.ge.f32.partialorder %v59, 0.0
  %v61 = vsel %vm60, 1.0, -1.0
  %v62 = vand.u32 2147483647, %v59
  %vm63 = vcmp.gt.f32.partialorder %v62, 1.0
  %v64 = vmax.f32 %v62, 1.0
  %v65 = vrcp.pop %v64
  %v66 = vmul.f32 %v64, %v65
  %v67 = vsub.f32 2.0, %v66
  %v68 = vmul.f32 %v65, %v67
  %v69 = vmul.f32 %v64, %v68
  %v70 = vsub.f32 2.0, %v69
  %v71 = vmul.f32 %v68, %v70
  %v72 = vsel %vm63, %v71, %v62
  %v73 = vmul.f32 %v72, %v72
  %v74 = vmul.f32 %v73, -0.0039602574
  %v75 = vadd.f32 %v74, 0.021509254
  %v76 = vmul.f32 %v75, %v73
  %v77 = vadd.f32 %v76, -0.055381697
  %v78 = vmul.f32 %v77, %v73
  %v79 = vadd.f32 %v78, 0.09601656
  %v80 = vmul.f32 %v79, %v73
  %v81 = vadd.f32 %v80, -0.13892041
  %v82 = vmul.f32 %v81, %v73
  %v83 = vadd.f32 %v82, 0.19943081
  %v84 = vmul.f32 %v83, %v73
  %v85 = vadd.f32 %v84, -0.33329538
  %v86 = vmul.f32 %v85, %v73
  %v87 = vadd.f32 %v86, 0.9999992
  %v88 = vmul.f32 %v72, %v87
  %v89 = vsub.f32 1.5707964, %v88
  %v90 = vsel %vm63, %v89, %v88
  %v91 = vmul.f32 %v61, %v90
  %v92 = vmul.f32 %v91, 0.31830987
  %v93 = vadd.f32 %v92, 0.5
  %v94 = vmul.f32 %v93, %v58
  %v95 = vsub.f32 %v51, %v94
  %v96 = vadd.f32 %v55, %v94
  %v97 = vsel %vm17, %v95, %v96
  %v98 = vsub.f32 %v25, %v28
  %v99 = vlaneseq
  %v100 = vshrl.u32 %v99, 7
  %v101 = vsub.s32 0, %v100
  %v102 = vrot.slane %v93, %v101
  %v103 = vmul.f32 %v102, %v98
  %v104 = vadd.f32 %v28, %v103
  %v105 = vsub.f32 %v25, %v103
  %v106 = vsub.f32 %v31, %v34
  %v107 = vlaneseq
  %v108 = vshrl.u32 %v107, 7
  %v109 = vsub.s32 2, %v108
  %v110 = vrot.slane %v93, %v109
  %v111 = vmul.f32 %v110, %v106
  %v112 = vadd.f32 %v34, %v111
  %v113 = vsub.f32 %v31, %v111
  %v114 = vsub.f32 %v37, %v40
  %v115 = vlaneseq
  %v116 = vshrl.u32 %v115, 7
  %v117 = vsub.s32 4, %v116
  %v118 = vrot.slane %v93, %v117
  %v119 = vmul.f32 %v118, %v114
  %v120 = vadd.f32 %v40, %v119
  %v121 = vsub.f32 %v37, %v119
  %v122 = vsub.f32 %v43, %v46
  %v123 = vlaneseq
  %v124 = vshrl.u32 %v123, 7
  %v125 = vsub.s32 6, %v124
  %v126 = vrot.slane %v93, %v125
  %v127 = vmul.f32 %v126, %v122
  %v128 = vadd.f32 %v46, %v127
  %v129 = vsub.f32 %v43, %v127
  %v131 = vrot.slane %v97, 1
  %v133 = vsel %vm50, %v131, %v131
  %v134 = vrot.slane %v97, 7
  %v136 = vsel %vm54, %v134, %v134
  %v137 = vsub.f32 %v133, %v97
  %v138 = vsub.f32 %v97, %v136
  %v139 = vsel %vm19, %v137, %v138
  %v140 = vmul.f32 %v139, 10.0
  %vm141 = vcmp.ge.f32.partialorder %v140, 0.0
  %v142 = vsel %vm141, 1.0, -1.0
  %v143 = vand.u32 2147483647, %v140
  %vm144 = vcmp.gt.f32.partialorder %v143, 1.0
  %v145 = vmax.f32 %v143, 1.0
  %v146 = vrcp.pop %v145
  %v147 = vmul.f32 %v145, %v146
  %v148 = vsub.f32 2.0, %v147
  %v149 = vmul.f32 %v146, %v148
  %v150 = vmul.f32 %v145, %v149
  %v151 = vsub.f32 2.0, %v150
  %v152 = vmul.f32 %v149, %v151
  %v153 = vsel %vm144, %v152, %v143
  %v154 = vmul.f32 %v153, %v153
  %v155 = vmul.f32 %v154, -0.0039602574
  %v156 = vadd.f32 %v155, 0.021509254
  %v157 = vmul.f32 %v156, %v154
  %v158 = vadd.f32 %v157, -0.055381697
  %v159 = vmul.f32 %v158, %v154
  %v160 = vadd.f32 %v159, 0.09601656
  %v161 = vmul.f32 %v160, %v154
  %v162 = vadd.f32 %v161, -0.13892041
  %v163 = vmul.f32 %v162, %v154
  %v164 = vadd.f32 %v163, 0.19943081
  %v165 = vmul.f32 %v164, %v154
  %v166 = vadd.f32 %v165, -0.33329538
  %v167 = vmul.f32 %v166, %v154
  %v168 = vadd.f32 %v167, 0.9999992
  %v169 = vmul.f32 %v153, %v168
  %v170 = vsub.f32 1.5707964, %v169
  %v171 = vsel %vm144, %v170, %v169
  %v172 = vmul.f32 %v142, %v171
  %v173 = vmul.f32 %v172, 0.31830987
  %v174 = vadd.f32 %v173, 0.5
  %v175 = vmul.f32 %v174, %v139
  %v176 = vsub.f32 %v133, %v175
  %v177 = vadd.f32 %v136, %v175
  %v178 = vsel %vm22, %v177, %v97
  %v179 = vsel %vm19, %v176, %v178
  %v180 = vsub.f32 %v105, %v112
  %v181 = vlaneseq
  %v182 = vshrl.u32 %v181, 7
  %v183 = vsub.s32 1, %v182
  %v184 = vrot.slane %v174, %v183
  %v185 = vmul.f32 %v184, %v180
  %v186 = vadd.f32 %v112, %v185
  %v187 = vsub.f32 %v105, %v185
  %v188 = vsub.f32 %v113, %v120
  %v189 = vlaneseq
  %v190 = vshrl.u32 %v189, 7
  %v191 = vsub.s32 3, %v190
  %v192 = vrot.slane %v174, %v191
  %v193 = vmul.f32 %v192, %v188
  %v194 = vadd.f32 %v120, %v193
  %v195 = vsub.f32 %v113, %v193
  %v196 = vsub.f32 %v121, %v128
  %v197 = vlaneseq
  %v198 = vshrl.u32 %v197, 7
  %v199 = vsub.s32 5, %v198
  %v200 = vrot.slane %v174, %v199
  %v201 = vmul.f32 %v200, %v196
  %v202 = vadd.f32 %v128, %v201
  %v203 = vsub.f32 %v121, %v201
  %v205 = vrot.slane %v179, 1
  %v207 = vsel %vm50, %v205, %v205
  %v208 = vrot.slane %v179, 7
  %v210 = vsel %vm54, %v208, %v208
  %v211 = vsub.f32 %v207, %v179
  %v212 = vsub.f32 %v179, %v210
  %v213 = vsel %vm17, %v211, %v212
  %v214 = vmul.f32 %v213, 10.0
  %vm215 = vcmp.ge.f32.partialorder %v214, 0.0
  %v216 = vsel %vm215, 1.0, -1.0
  %v217 = vand.u32 2147483647, %v214
  %vm218 = vcmp.gt.f32.partialorder %v217, 1.0
  %v219 = vmax.f32 %v217, 1.0
  %v220 = vrcp.pop %v219
  %v221 = vmul.f32 %v219, %v220
  %v222 = vsub.f32 2.0, %v221
  %v223 = vmul.f32 %v220, %v222
  %v224 = vmul.f32 %v219, %v223
  %v225 = vsub.f32 2.0, %v224
  %v226 = vmul.f32 %v223, %v225
  %v227 = vsel %vm218, %v226, %v217
  %v228 = vmul.f32 %v227, %v227
  %v229 = vmul.f32 %v228, -0.0039602574
  %v230 = vadd.f32 %v229, 0.021509254
  %v231 = vmul.f32 %v230, %v228
  %v232 = vadd.f32 %v231, -0.055381697
  %v233 = vmul.f32 %v232, %v228
  %v234 = vadd.f32 %v233, 0.09601656
  %v235 = vmul.f32 %v234, %v228
  %v236 = vadd.f32 %v235, -0.13892041
  %v237 = vmul.f32 %v236, %v228
  %v238 = vadd.f32 %v237, 0.19943081
  %v239 = vmul.f32 %v238, %v228
  %v240 = vadd.f32 %v239, -0.33329538
  %v241 = vmul.f32 %v240, %v228
  %v242 = vadd.f32 %v241, 0.9999992
  %v243 = vmul.f32 %v227, %v242
  %v244 = vsub.f32 1.5707964, %v243
  %v245 = vsel %vm218, %v244, %v243
  %v246 = vmul.f32 %v216, %v245
  %v247 = vmul.f32 %v246, 0.31830987
  %v248 = vadd.f32 %v247, 0.5
  %v249 = vmul.f32 %v248, %v213
  %v250 = vsub.f32 %v207, %v249
  %v251 = vadd.f32 %v210, %v249
  %v252 = vsel %vm17, %v250, %v251
  %v253 = vsub.f32 %v104, %v186
  %v254 = vlaneseq
  %v255 = vshrl.u32 %v254, 7
  %v256 = vsub.s32 0, %v255
  %v257 = vrot.slane %v248, %v256
  %v258 = vmul.f32 %v257, %v253
  %v259 = vadd.f32 %v186, %v258
  %v260 = vsub.f32 %v104, %v258
  %v261 = vsub.f32 %v187, %v194
  %v262 = vlaneseq
  %v263 = vshrl.u32 %v262, 7
  %v264 = vsub.s32 2, %v263
  %v265 = vrot.slane %v248, %v264
  %v266 = vmul.f32 %v265, %v261
  %v267 = vadd.f32 %v194, %v266
  %v268 = vsub.f32 %v187, %v266
  %v269 = vsub.f32 %v195, %v202
  %v270 = vlaneseq
  %v271 = vshrl.u32 %v270, 7
  %v272 = vsub.s32 4, %v271
  %v273 = vrot.slane %v248, %v272
  %v274 = vmul.f32 %v273, %v269
  %v275 = vadd.f32 %v202, %v274
  %v276 = vsub.f32 %v195, %v274
  %v277 = vsub.f32 %v203, %v129
  %v278 = vlaneseq
  %v279 = vshrl.u32 %v278, 7
  %v280 = vsub.s32 6, %v279
  %v281 = vrot.slane %v248, %v280
  %v282 = vmul.f32 %v281, %v277
  %v283 = vadd.f32 %v129, %v282
  %v284 = vsub.f32 %v203, %v282
  %v286 = vrot.slane %v252, 1
  %v288 = vsel %vm50, %v286, %v286
  %v289 = vrot.slane %v252, 7
  %v291 = vsel %vm54, %v289, %v289
  %v292 = vsub.f32 %v288, %v252
  %v293 = vsub.f32 %v252, %v291
  %v294 = vsel %vm19, %v292, %v293
  %v295 = vmul.f32 %v294, 10.0
  %vm296 = vcmp.ge.f32.partialorder %v295, 0.0
  %v297 = vsel %vm296, 1.0, -1.0
  %v298 = vand.u32 2147483647, %v295
  %vm299 = vcmp.gt.f32.partialorder %v298, 1.0
  %v300 = vmax.f32 %v298, 1.0
  %v301 = vrcp.pop %v300
  %v302 = vmul.f32 %v300, %v301
  %v303 = vsub.f32 2.0, %v302
  %v304 = vmul.f32 %v301, %v303
  %v305 = vmul.f32 %v300, %v304
  %v306 = vsub.f32 2.0, %v305
  %v307 = vmul.f32 %v304, %v306
  %v308 = vsel %vm299, %v307, %v298
  %v309 = vmul.f32 %v308, %v308
  %v310 = vmul.f32 %v309, -0.0039602574
  %v311 = vadd.f32 %v310, 0.021509254
  %v312 = vmul.f32 %v311, %v309
  %v313 = vadd.f32 %v312, -0.055381697
  %v314 = vmul.f32 %v313, %v309
  %v315 = vadd.f32 %v314, 0.09601656
  %v316 = vmul.f32 %v315, %v309
  %v317 = vadd.f32 %v316, -0.13892041
  %v318 = vmul.f32 %v317, %v309
  %v319 = vadd.f32 %v318, 0.19943081
  %v320 = vmul.f32 %v319, %v309
  %v321 = vadd.f32 %v320, -0.33329538
  %v322 = vmul.f32 %v321, %v309
  %v323 = vadd.f32 %v322, 0.9999992
  %v324 = vmul.f32 %v308, %v323
  %v325 = vsub.f32 1.5707964, %v324
  %v326 = vsel %vm299, %v325, %v324
  %v327 = vmul.f32 %v297, %v326
  %v328 = vmul.f32 %v327, 0.31830987
  %v329 = vadd.f32 %v328, 0.5
  %v330 = vmul.f32 %v329, %v294
  %v331 = vsub.f32 %v288, %v330
  %v332 = vadd.f32 %v291, %v330
  %v333 = vsel %vm22, %v332, %v252
  %v334 = vsel %vm19, %v331, %v333
  %v335 = vsub.f32 %v260, %v267
  %v336 = vlaneseq
  %v337 = vshrl.u32 %v336, 7
  %v338 = vsub.s32 1, %v337
  %v339 = vrot.slane %v329, %v338
  %v340 = vmul.f32 %v339, %v335
  %v341 = vadd.f32 %v267, %v340
  %v342 = vsub.f32 %v260, %v340
  %v343 = vsub.f32 %v268, %v275
  %v344 = vlaneseq
  %v345 = vshrl.u32 %v344, 7
  %v346 = vsub.s32 3, %v345
  %v347 = vrot.slane %v329, %v346
  %v348 = vmul.f32 %v347, %v343
  %v349 = vadd.f32 %v275, %v348
  %v350 = vsub.f32 %v268, %v348
  %v351 = vsub.f32 %v276, %v283
  %v352 = vlaneseq
  %v353 = vshrl.u32 %v352, 7
  %v354 = vsub.s32 5, %v353
  %v355 = vrot.slane %v329, %v354
  %v356 = vmul.f32 %v355, %v351
  %v357 = vadd.f32 %v283, %v356
  %v358 = vsub.f32 %v276, %v356
  %v360 = vrot.slane %v334, 1
  %v362 = vsel %vm50, %v360, %v360
  %v363 = vrot.slane %v334, 7
  %v365 = vsel %vm54, %v363, %v363
  %v366 = vsub.f32 %v362, %v334
  %v367 = vsub.f32 %v334, %v365
  %v368 = vsel %vm17, %v366, %v367
  %v369 = vmul.f32 %v368, 10.0
  %vm370 = vcmp.ge.f32.partialorder %v369, 0.0
  %v371 = vsel %vm370, 1.0, -1.0
  %v372 = vand.u32 2147483647, %v369
  %vm373 = vcmp.gt.f32.partialorder %v372, 1.0
  %v374 = vmax.f32 %v372, 1.0
  %v375 = vrcp.pop %v374
  %v376 = vmul.f32 %v374, %v375
  %v377 = vsub.f32 2.0, %v376
  %v378 = vmul.f32 %v375, %v377
  %v379 = vmul.f32 %v374, %v378
  %v380 = vsub.f32 2.0, %v379
  %v381 = vmul.f32 %v378, %v380
  %v382 = vsel %vm373, %v381, %v372
  %v383 = vmul.f32 %v382, %v382
  %v384 = vmul.f32 %v383, -0.0039602574
  %v385 = vadd.f32 %v384, 0.021509254
  %v386 = vmul.f32 %v385, %v383
  %v387 = vadd.f32 %v386, -0.055381697
  %v388 = vmul.f32 %v387, %v383
  %v389 = vadd.f32 %v388, 0.09601656
  %v390 = vmul.f32 %v389, %v383
  %v391 = vadd.f32 %v390, -0.13892041
  %v392 = vmul.f32 %v391, %v383
  %v393 = vadd.f32 %v392, 0.19943081
  %v394 = vmul.f32 %v393, %v383
  %v395 = vadd.f32 %v394, -0.33329538
  %v396 = vmul.f32 %v395, %v383
  %v397 = vadd.f32 %v396, 0.9999992
  %v398 = vmul.f32 %v382, %v397
  %v399 = vsub.f32 1.5707964, %v398
  %v400 = vsel %vm373, %v399, %v398
  %v401 = vmul.f32 %v371, %v400
  %v402 = vmul.f32 %v401, 0.31830987
  %v403 = vadd.f32 %v402, 0.5
  %v404 = vmul.f32 %v403, %v368
  %v405 = vsub.f32 %v362, %v404
  %v406 = vadd.f32 %v365, %v404
  %v407 = vsel %vm17, %v405, %v406
  %v408 = vsub.f32 %v259, %v341
  %v409 = vlaneseq
  %v410 = vshrl.u32 %v409, 7
  %v411 = vsub.s32 0, %v410
  %v412 = vrot.slane %v403, %v411
  %v413 = vmul.f32 %v412, %v408
  %v414 = vadd.f32 %v341, %v413
  %v415 = vsub.f32 %v259, %v413
  %v416 = vsub.f32 %v342, %v349
  %v417 = vlaneseq
  %v418 = vshrl.u32 %v417, 7
  %v419 = vsub.s32 2, %v418
  %v420 = vrot.slane %v403, %v419
  %v421 = vmul.f32 %v420, %v416
  %v422 = vadd.f32 %v349, %v421
  %v423 = vsub.f32 %v342, %v421
  %v424 = vsub.f32 %v350, %v357
  %v425 = vlaneseq
  %v426 = vshrl.u32 %v425, 7
  %v427 = vsub.s32 4, %v426
  %v428 = vrot.slane %v403, %v427
  %v429 = vmul.f32 %v428, %v424
  %v430 = vadd.f32 %v357, %v429
  %v431 = vsub.f32 %v350, %v429
  %v432 = vsub.f32 %v358, %v284
  %v433 = vlaneseq
  %v434 = vshrl.u32 %v433, 7
  %v435 = vsub.s32 6, %v434
  %v436 = vrot.slane %v403, %v435
  %v437 = vmul.f32 %v436, %v432
  %v438 = vadd.f32 %v284, %v437
  %v439 = vsub.f32 %v358, %v437
  %v441 = vrot.slane %v407, 1
  %v443 = vsel %vm50, %v441, %v441
  %v444 = vrot.slane %v407, 7
  %v446 = vsel %vm54, %v444, %v444
  %v447 = vsub.f32 %v443, %v407
  %v448 = vsub.f32 %v407, %v446
  %v449 = vsel %vm19, %v447, %v448
  %v450 = vmul.f32 %v449, 10.0
  %vm451 = vcmp.ge.f32.partialorder %v450, 0.0
  %v452 = vsel %vm451, 1.0, -1.0
  %v453 = vand.u32 2147483647, %v450
  %vm454 = vcmp.gt.f32.partialorder %v453, 1.0
  %v455 = vmax.f32 %v453, 1.0
  %v456 = vrcp.pop %v455
  %v457 = vmul.f32 %v455, %v456
  %v458 = vsub.f32 2.0, %v457
  %v459 = vmul.f32 %v456, %v458
  %v460 = vmul.f32 %v455, %v459
  %v461 = vsub.f32 2.0, %v460
  %v462 = vmul.f32 %v459, %v461
  %v463 = vsel %vm454, %v462, %v453
  %v464 = vmul.f32 %v463, %v463
  %v465 = vmul.f32 %v464, -0.0039602574
  %v466 = vadd.f32 %v465, 0.021509254
  %v467 = vmul.f32 %v466, %v464
  %v468 = vadd.f32 %v467, -0.055381697
  %v469 = vmul.f32 %v468, %v464
  %v470 = vadd.f32 %v469, 0.09601656
  %v471 = vmul.f32 %v470, %v464
  %v472 = vadd.f32 %v471, -0.13892041
  %v473 = vmul.f32 %v472, %v464
  %v474 = vadd.f32 %v473, 0.19943081
  %v475 = vmul.f32 %v474, %v464
  %v476 = vadd.f32 %v475, -0.33329538
  %v477 = vmul.f32 %v476, %v464
  %v478 = vadd.f32 %v477, 0.9999992
  %v479 = vmul.f32 %v463, %v478
  %v480 = vsub.f32 1.5707964, %v479
  %v481 = vsel %vm454, %v480, %v479
  %v482 = vmul.f32 %v452, %v481
  %v483 = vmul.f32 %v482, 0.31830987
  %v484 = vadd.f32 %v483, 0.5
  %v485 = vmul.f32 %v484, %v449
  %v486 = vsub.f32 %v443, %v485
  %v487 = vadd.f32 %v446, %v485
  %v488 = vsel %vm22, %v487, %v407
  %v489 = vsel %vm19, %v486, %v488
  %v490 = vsub.f32 %v415, %v422
  %v491 = vlaneseq
  %v492 = vshrl.u32 %v491, 7
  %v493 = vsub.s32 1, %v492
  %v494 = vrot.slane %v484, %v493
  %v495 = vmul.f32 %v494, %v490
  %v496 = vadd.f32 %v422, %v495
  %v497 = vsub.f32 %v415, %v495
  %v498 = vsub.f32 %v423, %v430
  %v499 = vlaneseq
  %v500 = vshrl.u32 %v499, 7
  %v501 = vsub.s32 3, %v500
  %v502 = vrot.slane %v484, %v501
  %v503 = vmul.f32 %v502, %v498
  %v504 = vadd.f32 %v430, %v503
  %v505 = vsub.f32 %v423, %v503
  %v506 = vsub.f32 %v431, %v438
  %v507 = vlaneseq
  %v508 = vshrl.u32 %v507, 7
  %v509 = vsub.s32 5, %v508
  %v510 = vrot.slane %v484, %v509
  %v511 = vmul.f32 %v510, %v506
  %v512 = vadd.f32 %v438, %v511
  %v513 = vsub.f32 %v431, %v511
  %v515 = vrot.slane %v489, 1
  %v517 = vsel %vm50, %v515, %v515
  %v518 = vrot.slane %v489, 7
  %v520 = vsel %vm54, %v518, %v518
  %v521 = vsub.f32 %v517, %v489
  %v522 = vsub.f32 %v489, %v520
  %v523 = vsel %vm17, %v521, %v522
  %v524 = vmul.f32 %v523, 10.0
  %vm525 = vcmp.ge.f32.partialorder %v524, 0.0
  %v526 = vsel %vm525, 1.0, -1.0
  %v527 = vand.u32 2147483647, %v524
  %vm528 = vcmp.gt.f32.partialorder %v527, 1.0
  %v529 = vmax.f32 %v527, 1.0
  %v530 = vrcp.pop %v529
  %v531 = vmul.f32 %v529, %v530
  %v532 = vsub.f32 2.0, %v531
  %v533 = vmul.f32 %v530, %v532
  %v534 = vmul.f32 %v529, %v533
  %v535 = vsub.f32 2.0, %v534
  %v536 = vmul.f32 %v533, %v535
  %v537 = vsel %vm528, %v536, %v527
  %v538 = vmul.f32 %v537, %v537
  %v539 = vmul.f32 %v538, -0.0039602574
  %v540 = vadd.f32 %v539, 0.021509254
  %v541 = vmul.f32 %v540, %v538
  %v542 = vadd.f32 %v541, -0.055381697
  %v543 = vmul.f32 %v542, %v538
  %v544 = vadd.f32 %v543, 0.09601656
  %v545 = vmul.f32 %v544, %v538
  %v546 = vadd.f32 %v545, -0.13892041
  %v547 = vmul.f32 %v546, %v538
  %v548 = vadd.f32 %v547, 0.19943081
  %v549 = vmul.f32 %v548, %v538
  %v550 = vadd.f32 %v549, -0.33329538
  %v551 = vmul.f32 %v550, %v538
  %v552 = vadd.f32 %v551, 0.9999992
  %v553 = vmul.f32 %v537, %v552
  %v554 = vsub.f32 1.5707964, %v553
  %v555 = vsel %vm528, %v554, %v553
  %v556 = vmul.f32 %v526, %v555
  %v557 = vmul.f32 %v556, 0.31830987
  %v558 = vadd.f32 %v557, 0.5
  %v559 = vmul.f32 %v558, %v523
  %v560 = vsub.f32 %v517, %v559
  %v561 = vadd.f32 %v520, %v559
  %v562 = vsel %vm17, %v560, %v561
  %v563 = vsub.f32 %v414, %v496
  %v564 = vlaneseq
  %v565 = vshrl.u32 %v564, 7
  %v566 = vsub.s32 0, %v565
  %v567 = vrot.slane %v558, %v566
  %v568 = vmul.f32 %v567, %v563
  %v569 = vadd.f32 %v496, %v568
  %v570 = vsub.f32 %v414, %v568
  %v571 = vsub.f32 %v497, %v504
  %v572 = vlaneseq
  %v573 = vshrl.u32 %v572, 7
  %v574 = vsub.s32 2, %v573
  %v575 = vrot.slane %v558, %v574
  %v576 = vmul.f32 %v575, %v571
  %v577 = vadd.f32 %v504, %v576
  %v578 = vsub.f32 %v497, %v576
  %v579 = vsub.f32 %v505, %v512
  %v580 = vlaneseq
  %v581 = vshrl.u32 %v580, 7
  %v582 = vsub.s32 4, %v581
  %v583 = vrot.slane %v558, %v582
  %v584 = vmul.f32 %v583, %v579
  %v585 = vadd.f32 %v512, %v584
  %v586 = vsub.f32 %v505, %v584
  %v587 = vsub.f32 %v513, %v439
  %v588 = vlaneseq
  %v589 = vshrl.u32 %v588, 7
  %v590 = vsub.s32 6, %v589
  %v591 = vrot.slane %v558, %v590
  %v592 = vmul.f32 %v591, %v587
  %v593 = vadd.f32 %v439, %v592
  %v594 = vsub.f32 %v513, %v592
  %v596 = vrot.slane %v562, 1
  %v598 = vsel %vm50, %v596, %v596
  %v599 = vrot.slane %v562, 7
  %v601 = vsel %vm54, %v599, %v599
  %v602 = vsub.f32 %v598, %v562
  %v603 = vsub.f32 %v562, %v601
  %v604 = vsel %vm19, %v602, %v603
  %v605 = vmul.f32 %v604, 10.0
  %vm606 = vcmp.ge.f32.partialorder %v605, 0.0
  %v607 = vsel %vm606, 1.0, -1.0
  %v608 = vand.u32 2147483647, %v605
  %vm609 = vcmp.gt.f32.partialorder %v608, 1.0
  %v610 = vmax.f32 %v608, 1.0
  %v611 = vrcp.pop %v610
  %v612 = vmul.f32 %v610, %v611
  %v613 = vsub.f32 2.0, %v612
  %v614 = vmul.f32 %v611, %v613
  %v615 = vmul.f32 %v610, %v614
  %v616 = vsub.f32 2.0, %v615
  %v617 = vmul.f32 %v614, %v616
  %v618 = vsel %vm609, %v617, %v608
  %v619 = vmul.f32 %v618, %v618
  %v620 = vmul.f32 %v619, -0.0039602574
  %v621 = vadd.f32 %v620, 0.021509254
  %v622 = vmul.f32 %v621, %v619
  %v623 = vadd.f32 %v622, -0.055381697
  %v624 = vmul.f32 %v623, %v619
  %v625 = vadd.f32 %v624, 0.09601656
  %v626 = vmul.f32 %v625, %v619
  %v627 = vadd.f32 %v626, -0.13892041
  %v628 = vmul.f32 %v627, %v619
  %v629 = vadd.f32 %v628, 0.19943081
  %v630 = vmul.f32 %v629, %v619
  %v631 = vadd.f32 %v630, -0.33329538
  %v632 = vmul.f32 %v631, %v619
  %v633 = vadd.f32 %v632, 0.9999992
  %v634 = vmul.f32 %v618, %v633
  %v635 = vsub.f32 1.5707964, %v634
  %v636 = vsel %vm609, %v635, %v634
  %v637 = vmul.f32 %v607, %v636
  %v638 = vmul.f32 %v637, 0.31830987
  %v639 = vadd.f32 %v638, 0.5
  %v640 = vsub.f32 %v570, %v577
  %v641 = vlaneseq
  %v642 = vshrl.u32 %v641, 7
  %v643 = vsub.s32 1, %v642
  %v644 = vrot.slane %v639, %v643
  %v645 = vmul.f32 %v644, %v640
  %v646 = vadd.f32 %v577, %v645
  %v647 = vsub.f32 %v570, %v645
  %v648 = vsub.f32 %v578, %v585
  %v649 = vlaneseq
  %v650 = vshrl.u32 %v649, 7
  %v651 = vsub.s32 3, %v650
  %v652 = vrot.slane %v639, %v651
  %v653 = vmul.f32 %v652, %v648
  %v654 = vadd.f32 %v585, %v653
  %v655 = vsub.f32 %v578, %v653
  %v656 = vsub.f32 %v586, %v593
  %v657 = vlaneseq
  %v658 = vshrl.u32 %v657, 7
  %v659 = vsub.s32 5, %v658
  %v660 = vrot.slane %v639, %v659
  %v661 = vmul.f32 %v660, %v656
  %v662 = vadd.f32 %v593, %v661
  %v663 = vsub.f32 %v586, %v661
  %v664 = vld [vmem:[%s1] sm:$0xff]
  %v665 = vsub.f32 0.0, %v664
  %v667 = vrot.slane %v665, 7
  %v669 = vsel %vm54, %v667, %v667
  %vm670 = vcmp.ge.s32.totalorder %v14, 1
  %vm671 = vcmp.lt.f32.partialorder %v669, %v665
  %vm672 = vcmp.eq.f32.partialorder %v669, %v665
  %vm673 = vmand %vm672, %vm670
  %vm674 = vmor %vm671, %vm673
  %v675 = vsel %vm674, 1, 0
  %v676 = vrot.slane %v665, 6
  %vm678 = vcmask 1041408
  %v679 = vsel %vm678, %v676, %v676
  %vm680 = vcmp.ge.s32.totalorder %v14, 2
  %vm681 = vcmp.lt.f32.partialorder %v679, %v665
  %vm682 = vcmp.eq.f32.partialorder %v679, %v665
  %vm683 = vmand %vm682, %vm680
  %vm684 = vmor %vm681, %vm683
  %v685 = vsel %vm684, 1, 0
  %v686 = vadd.s32 %v675, %v685
  %v687 = vrot.slane %v665, 5
  %vm689 = vcmask 1042432
  %v690 = vsel %vm689, %v687, %v687
  %vm691 = vcmp.ge.s32.totalorder %v14, 3
  %vm692 = vcmp.lt.f32.partialorder %v690, %v665
  %vm693 = vcmp.eq.f32.partialorder %v690, %v665
  %vm694 = vmand %vm693, %vm691
  %vm695 = vmor %vm692, %vm694
  %v696 = vsel %vm695, 1, 0
  %v697 = vadd.s32 %v686, %v696
  %v698 = vrot.slane %v665, 4
  %vm700 = vcmask 1043456
  %v701 = vsel %vm700, %v698, %v698
  %vm702 = vcmp.ge.s32.totalorder %v14, 4
  %vm703 = vcmp.lt.f32.partialorder %v701, %v665
  %vm704 = vcmp.eq.f32.partialorder %v701, %v665
  %vm705 = vmand %vm704, %vm702
  %vm706 = vmor %vm703, %vm705
  %v707 = vsel %vm706, 1, 0
  %v708 = vadd.s32 %v697, %v707
  %v709 = vrot.slane %v665, 3
  %vm711 = vcmask 1044480
  %v712 = vsel %vm711, %v709, %v709
  %vm713 = vcmp.ge.s32.totalorder %v14, 5
  %vm714 = vcmp.lt.f32.partialorder %v712, %v665
  %vm715 = vcmp.eq.f32.partialorder %v712, %v665
  %vm716 = vmand %vm715, %vm713
  %vm717 = vmor %vm714, %vm716
  %v718 = vsel %vm717, 1, 0
  %v719 = vadd.s32 %v708, %v718
  %v720 = vrot.slane %v665, 2
  %vm722 = vcmask 1045504
  %v723 = vsel %vm722, %v720, %v720
  %vm724 = vcmp.ge.s32.totalorder %v14, 6
  %vm725 = vcmp.lt.f32.partialorder %v723, %v665
  %vm726 = vcmp.eq.f32.partialorder %v723, %v665
  %vm727 = vmand %vm726, %vm724
  %vm728 = vmor %vm725, %vm727
  %v729 = vsel %vm728, 1, 0
  %v730 = vadd.s32 %v719, %v729
  %v731 = vrot.slane %v665, 1
  %v733 = vsel %vm50, %v731, %v731
  %vm734 = vcmp.ge.s32.totalorder %v14, 7
  %vm735 = vcmp.lt.f32.partialorder %v733, %v665
  %vm736 = vcmp.eq.f32.partialorder %v733, %v665
  %vm737 = vmand %vm736, %vm734
  %vm738 = vmor %vm735, %vm737
  %v739 = vsel %vm738, 1, 0
  %v740 = vadd.s32 %v730, %v739
  %v741 = vmax.f32 %v569, 0.0
  %v742 = vmin.f32 %v741, 1.0
  %vm743 = vcmp.eq.s32.totalorder %v740, 0
  %v744 = vsub.f32 1.0, %v742
  %v745 = vsel %vm743, %v742, %v744
  %v746 = vlog2.pop %v745
  %v747 = vmul.f32 %v746, 0.6931472
  %v748 = vmax.f32 %v747, -100.0
  %v749 = vsub.f32 0.0, %v748
  %v750 = vmax.f32 %v646, 0.0
  %v751 = vmin.f32 %v750, 1.0
  %vm752 = vcmp.eq.s32.totalorder %v740, 1
  %v753 = vsub.f32 1.0, %v751
  %v754 = vsel %vm752, %v751, %v753
  %v755 = vlog2.pop %v754
  %v756 = vmul.f32 %v755, 0.6931472
  %v757 = vmax.f32 %v756, -100.0
  %v758 = vsub.f32 %v749, %v757
  %v759 = vmax.f32 %v647, 0.0
  %v760 = vmin.f32 %v759, 1.0
  %vm761 = vcmp.eq.s32.totalorder %v740, 2
  %v762 = vsub.f32 1.0, %v760
  %v763 = vsel %vm761, %v760, %v762
  %v764 = vlog2.pop %v763
  %v765 = vmul.f32 %v764, 0.6931472
  %v766 = vmax.f32 %v765, -100.0
  %v767 = vsub.f32 %v758, %v766
  %v768 = vmax.f32 %v654, 0.0
  %v769 = vmin.f32 %v768, 1.0
  %vm770 = vcmp.eq.s32.totalorder %v740, 3
  %v771 = vsub.f32 1.0, %v769
  %v772 = vsel %vm770, %v769, %v771
  %v773 = vlog2.pop %v772
  %v774 = vmul.f32 %v773, 0.6931472
  %v775 = vmax.f32 %v774, -100.0
  %v776 = vsub.f32 %v767, %v775
  %v777 = vmax.f32 %v655, 0.0
  %v778 = vmin.f32 %v777, 1.0
  %vm779 = vcmp.eq.s32.totalorder %v740, 4
  %v780 = vsub.f32 1.0, %v778
  %v781 = vsel %vm779, %v778, %v780
  %v782 = vlog2.pop %v781
  %v783 = vmul.f32 %v782, 0.6931472
  %v784 = vmax.f32 %v783, -100.0
  %v785 = vsub.f32 %v776, %v784
  %v786 = vmax.f32 %v662, 0.0
  %v787 = vmin.f32 %v786, 1.0
  %vm788 = vcmp.eq.s32.totalorder %v740, 5
  %v789 = vsub.f32 1.0, %v787
  %v790 = vsel %vm788, %v787, %v789
  %v791 = vlog2.pop %v790
  %v792 = vmul.f32 %v791, 0.6931472
  %v793 = vmax.f32 %v792, -100.0
  %v794 = vsub.f32 %v785, %v793
  %v795 = vmax.f32 %v663, 0.0
  %v796 = vmin.f32 %v795, 1.0
  %vm797 = vcmp.eq.s32.totalorder %v740, 6
  %v798 = vsub.f32 1.0, %v796
  %v799 = vsel %vm797, %v796, %v798
  %v800 = vlog2.pop %v799
  %v801 = vmul.f32 %v800, 0.6931472
  %v802 = vmax.f32 %v801, -100.0
  %v803 = vsub.f32 %v794, %v802
  %v804 = vmax.f32 %v594, 0.0
  %v805 = vmin.f32 %v804, 1.0
  %vm806 = vcmp.eq.s32.totalorder %v740, 7
  %v807 = vsub.f32 1.0, %v805
  %v808 = vsel %vm806, %v805, %v807
  %v809 = vlog2.pop %v808
  %v810 = vmul.f32 %v809, 0.6931472
  %v811 = vmax.f32 %v810, -100.0
  %v812 = vsub.f32 %v803, %v811
  %v813 = vrot.slane %v812, 4
  %v814 = vadd.f32 %v812, %v813
  %v815 = vrot.slane %v814, 2
  %v816 = vadd.f32 %v814, %v815
  %v817 = vrot.slane %v816, 1
  %v818 = vadd.f32 %v816, %v817
  %819 = vst [vmem:[%s2] sm:$0x1] %v818
  // Predicated region
  $region10: #{loss_fn.1} parent=0 // pred_check
    _
  $region11: #{loss_fn.1} parent=0 // pred_check_branch
    %821 = sbr.rel (0) target = $region13
  $region12: #{loss_fn.1} parent=0 // pred_region
    _
  $region13: #{loss_fn.1} parent=0 // pred_fallthru
    _
  // Predicated region
  $region14: #{loss_fn.1} parent=0 // pred_check
    _
  $region15: #{loss_fn.1} parent=0 // pred_check_branch
    %823 = sbr.rel (0) target = $region17
  $region16: #{loss_fn.1} parent=0 // pred_region
    _
  $region17: #{loss_fn.1} parent=0 // pred_fallthru
    _

</llo_original>
